<compile_context>
chip_gen: v5e
topology: v5e:2x2
jax: 0.10.0
libtpu: 0.0.40
codegen_flags: <defaults>
</compile_context>

<pallas_src>
import functools

import jax
import jax.numpy as jnp
import numpy as np
from jax.experimental import pallas as pl
from jax.experimental.pallas import tpu as pltpu


def _round_up(x, m):
    return (x + m - 1) // m * m


# ------------------------------ Pallas kernels ------------------------------

def _conv3x3_flat(src_ref, w_ref, Wp, L, off):
    """3x3 conv (pad=1) as 9 shifted GEMMs with f32 accumulation.

    src_ref is a VMEM ref over a row-major flattened spatial axis of width Wp;
    flat index `off + h*Wp + w` holds the activation at spatial (h, w) and the
    1-row / 1-element borders around the image hold zeros.  Returns an
    (L, Cout) f32 value on the extended output grid (Ho rows of Wp positions;
    the last 2 positions of each row are junk handled by the caller).
    """
    wdt = w_ref.dtype
    acc = None
    for kh in range(3):
        for kw in range(3):
            start = off + (kh - 1) * Wp + (kw - 1)
            patch = src_ref[pl.ds(start, L), :].astype(wdt)
            d = jnp.dot(patch, w_ref[kh * 3 + kw],
                        preferred_element_type=jnp.float32)
            acc = d if acc is None else acc + d
    return acc


def _store_out1(h1_ref, out1_f32, F, L):
    # h1 holds out1 with a zeroed 1-pixel halo, laid out for _conv3x3_flat(off=F).
    h1_ref[...] = jnp.zeros_like(h1_ref)
    h1_ref[pl.ds(F, L), :] = out1_f32


def _kernel_identity(xp_ref, w1_ref, b1_ref, w2_ref, b2_ref, m1_ref,
                     o_ref, h1_ref, *, Wp, L1, F):
    """relu(conv2(relu(conv1(x) + b1)) + b2 + x)   (stride=1, Cin == planes)."""
    acc1 = _conv3x3_flat(xp_ref, w1_ref, Wp, L1, Wp + 1)
    out1 = jnp.maximum(acc1 + b1_ref[...], 0.0) * m1_ref[...]
    _store_out1(h1_ref, out1, F, L1)
    acc2 = _conv3x3_flat(h1_ref, w2_ref, Wp, L1, F)
    res = xp_ref[pl.ds(Wp + 1, L1), :].astype(jnp.float32)
    o_ref[...] = jnp.maximum(acc2 + b2_ref[...] + res, 0.0).astype(o_ref.dtype)


def _kernel_proj_s1(xp_ref, w1_ref, b1_ref, w2_ref, b2_ref, wsc_ref, m1_ref,
                    o_ref, h1_ref, *, Wp, L1, F):
    """Stride-1 block with 1x1 projection shortcut (Cin != planes)."""
    acc1 = _conv3x3_flat(xp_ref, w1_ref, Wp, L1, Wp + 1)
    out1 = jnp.maximum(acc1 + b1_ref[...], 0.0) * m1_ref[...]
    _store_out1(h1_ref, out1, F, L1)
    acc2 = _conv3x3_flat(h1_ref, w2_ref, Wp, L1, F)
    res = jnp.dot(xp_ref[pl.ds(Wp + 1, L1), :].astype(wsc_ref.dtype),
                  wsc_ref[...], preferred_element_type=jnp.float32)
    o_ref[...] = jnp.maximum(acc2 + b2_ref[...] + res, 0.0).astype(o_ref.dtype)


def _kernel_proj_strided(xt_ref, psc_ref, w1_ref, b1_ref, w2_ref, b2_ref,
                         wsc_ref, m1_ref, o_ref, h1_ref, *, Wp, L1, F):
    """Strided block: conv1 taps pre-gathered (9, L1, Cin); 1x1 strided shortcut."""
    wdt = w1_ref.dtype
    acc1 = None
    for t in range(9):
        d = jnp.dot(xt_ref[t].astype(wdt), w1_ref[t],
                    preferred_element_type=jnp.float32)
        acc1 = d if acc1 is None else acc1 + d
    out1 = jnp.maximum(acc1 + b1_ref[...], 0.0) * m1_ref[...]
    _store_out1(h1_ref, out1, F, L1)
    acc2 = _conv3x3_flat(h1_ref, w2_ref, Wp, L1, F)
    res = jnp.dot(psc_ref[...].astype(wsc_ref.dtype), wsc_ref[...],
                  preferred_element_type=jnp.float32)
    o_ref[...] = jnp.maximum(acc2 + b2_ref[...] + res, 0.0).astype(o_ref.dtype)


# ------------------------------ glue (plain JAX) -----------------------------

def _conv_taps(w):
    """PyTorch (Cout, Cin, kh, kw) -> (kh*kw, Cin, Cout) tap matrices."""
    co, ci, kh, kw = w.shape
    return jnp.transpose(w, (2, 3, 1, 0)).reshape(kh * kw, ci, co)


def basic_block_forward(x_nchw, params, *, stride, compute_dtype=jnp.bfloat16):
    """BasicBlock.forward with bn=False.  x_nchw: (N, Cin, H, W) float32."""
    x = jnp.transpose(x_nchw, (0, 2, 3, 1)).astype(jnp.float32)       # NHWC
    N, H, W, Cin = x.shape
    P = params["conv1_w"].shape[0]
    s = stride
    Ho = (H - 1) // s + 1
    Wo = (W - 1) // s + 1
    Wp = Wo + 2                        # extended output-row width (2 junk cols)
    L1 = Ho * Wp                       # extended-flat spatial length
    F = _round_up(Wp + 1, 8)           # aligned offset of out1(0,0) in h1 scratch
    Lh = _round_up(F + L1 + Wp + 2, 8)
    has_proj = (s != 1) or (Cin != P)

    w1 = _conv_taps(params["conv1_w"]).astype(compute_dtype)          # (9, Cin, P)
    w2 = _conv_taps(params["conv2_w"]).astype(compute_dtype)          # (9, P, P)
    b1 = params["conv1_b"].reshape(1, P).astype(jnp.float32)
    b2 = params["conv2_b"].reshape(1, P).astype(jnp.float32)
    # zero the 2 junk columns of each extended row (they become conv2's halo)
    m1 = (jnp.arange(L1, dtype=jnp.int32) % Wp < Wo
          ).astype(jnp.float32).reshape(L1, 1)

    w1_spec = pl.BlockSpec((9, Cin, P), lambda n: (0, 0, 0))
    w2_spec = pl.BlockSpec((9, P, P), lambda n: (0, 0, 0))
    b_spec = pl.BlockSpec((1, P), lambda n: (0, 0))
    m1_spec = pl.BlockSpec((L1, 1), lambda n: (0, 0))
    wsc_spec = pl.BlockSpec((Cin, P), lambda n: (0, 0))
    o_spec = pl.BlockSpec((None, L1, P), lambda n: (n, 0, 0))

    xpad = jnp.pad(x, ((0, 0), (1, 1), (1, 1), (0, 0)))               # 1-px halo

    if s == 1:
        Hp = H + 2
        Lx = _round_up(Hp * Wp + 2, 8)
        xp = xpad.reshape(N, Hp * Wp, Cin)
        xp = jnp.pad(xp, ((0, 0), (0, Lx - Hp * Wp), (0, 0)))
        xp_spec = pl.BlockSpec((None, Lx, Cin), lambda n: (n, 0, 0))
        if has_proj:
            wsc = _conv_taps(params["shortcut_w"]).reshape(Cin, P).astype(compute_dtype)
            kern = functools.partial(_kernel_proj_s1, Wp=Wp, L1=L1, F=F)
            inputs = [xp, w1, b1, w2, b2, wsc, m1]
            in_specs = [xp_spec, w1_spec, b_spec, w2_spec, b_spec, wsc_spec, m1_spec]
        else:
            kern = functools.partial(_kernel_identity, Wp=Wp, L1=L1, F=F)
            inputs = [xp, w1, b1, w2, b2, m1]
            in_specs = [xp_spec, w1_spec, b_spec, w2_spec, b_spec, m1_spec]
    else:
        # Strided conv1: gather its 9 (Ho, Wo) taps in XLA (~9/s^2 of the input),
        # then everything else runs fully fused in VMEM.
        taps = [xpad[:, kh:kh + s * Ho:s, kw:kw + s * Wo:s, :]
                for kh in range(3) for kw in range(3)]
        xt = jnp.stack(taps, axis=1)                                   # (N,9,Ho,Wo,C)
        xt = jnp.pad(xt, ((0, 0), (0, 0), (0, 0), (0, Wp - Wo), (0, 0)))
        xt = xt.reshape(N, 9, L1, Cin)
        psc = x[:, ::s, ::s, :][:, :Ho, :Wo, :]
        psc = jnp.pad(psc, ((0, 0), (0, 0), (0, Wp - Wo), (0, 0))).reshape(N, L1, Cin)
        wsc = _conv_taps(params["shortcut_w"]).reshape(Cin, P).astype(compute_dtype)
        kern = functools.partial(_kernel_proj_strided, Wp=Wp, L1=L1, F=F)
        inputs = [xt, psc, w1, b1, w2, b2, wsc, m1]
        in_specs = [pl.BlockSpec((None, 9, L1, Cin), lambda n: (n, 0, 0, 0)),
                    pl.BlockSpec((None, L1, Cin), lambda n: (n, 0, 0)),
                    w1_spec, b_spec, w2_spec, b_spec, wsc_spec, m1_spec]

    flops = 2 * N * L1 * (9 * Cin * P + 9 * P * P + (Cin * P if has_proj else 0))
    bytes_accessed = int(sum(a.size * a.dtype.itemsize for a in inputs)
                         + N * L1 * P * 4)

    out_flat = pl.pallas_call(
        kern,
        out_shape=jax.ShapeDtypeStruct((N, L1, P), jnp.float32),
        grid_spec=pltpu.PrefetchScalarGridSpec(
            num_scalar_prefetch=0,
            grid=(N,),
            in_specs=in_specs,
            out_specs=o_spec,
            scratch_shapes=[pltpu.VMEM((Lh, P), jnp.float32)]),
        compiler_params=pltpu.CompilerParams(
            dimension_semantics=("parallel",)),
        cost_estimate=pl.CostEstimate(flops=int(flops), transcendentals=0,
                                      bytes_accessed=bytes_accessed),
    )(*inputs)

    out = out_flat.reshape(N, Ho, Wp, P)[:, :, :Wo, :]
    return jnp.transpose(out, (0, 3, 1, 2))                            # NHWC -> NCHW


# ------------------------------ pure-JAX reference ---------------------------

def _ref_forward(x, params, stride):
    dn = ("NCHW", "OIHW", "NCHW")
    planes = params["conv1_w"].shape[0]
    out = jax.lax.conv_general_dilated(x, params["conv1_w"], (stride, stride),
                                       [(1, 1), (1, 1)], dimension_numbers=dn)
    out = jnp.maximum(out + params["conv1_b"][None, :, None, None], 0.0)
    out2 = jax.lax.conv_general_dilated(out, params["conv2_w"], (1, 1),
                                        [(1, 1), (1, 1)], dimension_numbers=dn)
    out2 = out2 + params["conv2_b"][None, :, None, None]
    if stride != 1 or x.shape[1] != planes:
        sc = jax.lax.conv_general_dilated(x, params["shortcut_w"], (stride, stride),
                                          [(0, 0), (0, 0)], dimension_numbers=dn)
    else:
        sc = x
    return jnp.maximum(out2 + sc, 0.0)


# ------------------------------------ main -----------------------------------

if __name__ == "__main__":
    def _make_case(key, N, Cin, planes, H, W, need_sc):
        ks = jax.random.split(key, 6)
        x = jax.random.normal(ks[0], (N, Cin, H, W), jnp.float32)
        params = {
            "conv1_w": jax.random.normal(ks[1], (planes, Cin, 3, 3), jnp.float32) * 0.1,
            "conv1_b": jax.random.normal(ks[2], (planes,), jnp.float32) * 0.1,
            "conv2_w": jax.random.normal(ks[3], (planes, planes, 3, 3), jnp.float32) * 0.1,
            "conv2_b": jax.random.normal(ks[4], (planes,), jnp.float32) * 0.1,
        }
        if need_sc:
            params["shortcut_w"] = jax.random.normal(
                ks[5], (planes, Cin, 1, 1), jnp.float32) * 0.1
        return x, params

    key = jax.random.PRNGKey(0)
    k1, k2, k3 = jax.random.split(key, 3)

    # Case 1: stride-2 downsampling block (1x1 projection shortcut), f32 then bf16.
    x1, params1 = _make_case(k1, 2, 4, 8, 16, 16, need_sc=True)
    fwd1 = jax.jit(functools.partial(basic_block_forward, stride=2,
                                     compute_dtype=jnp.float32))
    out1 = jax.block_until_ready(fwd1(x1, params1))
    assert out1.shape == (2, 8, 8, 8)
    ref1 = _ref_forward(x1, params1, 2)
    np.testing.assert_allclose(np.asarray(out1), np.asarray(ref1),
                               atol=1e-4, rtol=1e-4)

    fwd1_bf16 = jax.jit(functools.partial(basic_block_forward, stride=2))
    out1b = jax.block_until_ready(fwd1_bf16(x1, params1))
    np.testing.assert_allclose(np.asarray(out1b), np.asarray(ref1),
                               atol=5e-2, rtol=5e-2)

    # Case 2: identity-shortcut block (stride=1, Cin == planes), f32.
    x2, params2 = _make_case(k2, 2, 8, 8, 16, 16, need_sc=False)
    fwd2 = jax.jit(functools.partial(basic_block_forward, stride=1,
                                     compute_dtype=jnp.float32))
    out2 = jax.block_until_ready(fwd2(x2, params2))
    assert out2.shape == (2, 8, 16, 16)
    ref2 = _ref_forward(x2, params2, 1)
    np.testing.assert_allclose(np.asarray(out2), np.asarray(ref2),
                               atol=1e-4, rtol=1e-4)

    # Case 3: stride-1 block with channel-projection shortcut (Cin != planes), f32.
    x3, params3 = _make_case(k3, 2, 4, 8, 16, 16, need_sc=True)
    fwd3 = jax.jit(functools.partial(basic_block_forward, stride=1,
                                     compute_dtype=jnp.float32))
    out3 = jax.block_until_ready(fwd3(x3, params3))
    assert out3.shape == (2, 8, 16, 16)
    ref3 = _ref_forward(x3, params3, 1)
    np.testing.assert_allclose(np.asarray(out3), np.asarray(ref3),
                               atol=1e-4, rtol=1e-4)

    print("KERNEL_OK")
</pallas_src>

<mosaic_0001>
module attributes {stable_mosaic.version = 11 : i64} {
  func.func @_kernel_proj_strided(%arg0: i32, %arg1: memref<1x9x80x4xf32, #tpu.memory_space<vmem>>, %arg2: memref<1x80x4xf32, #tpu.memory_space<vmem>>, %arg3: memref<9x4x8xf32, #tpu.memory_space<vmem>>, %arg4: memref<1x8xf32, #tpu.memory_space<vmem>>, %arg5: memref<9x8x8xf32, #tpu.memory_space<vmem>>, %arg6: memref<1x8xf32, #tpu.memory_space<vmem>>, %arg7: memref<4x8xf32, #tpu.memory_space<vmem>>, %arg8: memref<80x1xf32, #tpu.memory_space<vmem>>, %arg9: memref<1x80x8xf32, #tpu.memory_space<vmem>>, %arg10: memref<112x8xf32, #tpu.memory_space<vmem>>) attributes {dimension_semantics = [#tpu.dimension_semantics<parallel>], iteration_bounds = array<i64: 2>, scalar_prefetch = 0 : i64, scratch_operands = 1 : i64, tpu.core_type = #tpu.core_type<tc>, window_params = [{transform_indices = @transform_0, window_bounds = array<i64: 1, 9, 80, 4>}, {transform_indices = @transform_1, window_bounds = array<i64: 1, 80, 4>}, {pipeline_mode = #tpu.pipeline_mode<synchronous>, transform_indices = @transform_2, window_bounds = array<i64: 9, 4, 8>}, {pipeline_mode = #tpu.pipeline_mode<synchronous>, transform_indices = @transform_3, window_bounds = array<i64: 1, 8>}, {pipeline_mode = #tpu.pipeline_mode<synchronous>, transform_indices = @transform_4, window_bounds = array<i64: 9, 8, 8>}, {pipeline_mode = #tpu.pipeline_mode<synchronous>, transform_indices = @transform_5, window_bounds = array<i64: 1, 8>}, {pipeline_mode = #tpu.pipeline_mode<synchronous>, transform_indices = @transform_6, window_bounds = array<i64: 4, 8>}, {pipeline_mode = #tpu.pipeline_mode<synchronous>, transform_indices = @transform_7, window_bounds = array<i64: 80, 1>}, {transform_indices = @transform_8, window_bounds = array<i64: 1, 80, 8>}]} {
    %c0 = arith.constant 0 : index
    %c0_0 = arith.constant 0 : index
    %c0_1 = arith.constant 0 : index
    %c0_2 = arith.constant 0 : index
    %0 = vector.load %arg1[%c0, %c0_0, %c0_1, %c0_2] : memref<1x9x80x4xf32, #tpu.memory_space<vmem>>, vector<1x1x80x4xf32>
    %1 = vector.shape_cast %0 : vector<1x1x80x4xf32> to vector<80x4xf32>
    %c0_3 = arith.constant 0 : index
    %c0_4 = arith.constant 0 : index
    %c0_5 = arith.constant 0 : index
    %2 = vector.load %arg3[%c0_3, %c0_4, %c0_5] : memref<9x4x8xf32, #tpu.memory_space<vmem>>, vector<1x4x8xf32>
    %3 = vector.shape_cast %2 : vector<1x4x8xf32> to vector<4x8xf32>
    %cst = arith.constant dense<0.000000e+00> : vector<80x8xf32>
    %4 = tpu.matmul %1, %3, %cst {dimension_numbers = #tpu.dot_dimension_numbers<[1], [0], [0], [1], [0, 0, 1, 1], [], []>} : vector<80x4xf32>, vector<4x8xf32>, vector<80x8xf32> -> vector<80x8xf32>
    %c0_6 = arith.constant 0 : index
    %c1 = arith.constant 1 : index
    %c0_7 = arith.constant 0 : index
    %c0_8 = arith.constant 0 : index
    %5 = vector.load %arg1[%c0_6, %c1, %c0_7, %c0_8] : memref<1x9x80x4xf32, #tpu.memory_space<vmem>>, vector<1x1x80x4xf32>
    %6 = vector.shape_cast %5 : vector<1x1x80x4xf32> to vector<80x4xf32>
    %c1_9 = arith.constant 1 : index
    %c0_10 = arith.constant 0 : index
    %c0_11 = arith.constant 0 : index
    %7 = vector.load %arg3[%c1_9, %c0_10, %c0_11] : memref<9x4x8xf32, #tpu.memory_space<vmem>>, vector<1x4x8xf32>
    %8 = vector.shape_cast %7 : vector<1x4x8xf32> to vector<4x8xf32>
    %cst_12 = arith.constant dense<0.000000e+00> : vector<80x8xf32>
    %9 = tpu.matmul %6, %8, %cst_12 {dimension_numbers = #tpu.dot_dimension_numbers<[1], [0], [0], [1], [0, 0, 1, 1], [], []>} : vector<80x4xf32>, vector<4x8xf32>, vector<80x8xf32> -> vector<80x8xf32>
    %10 = arith.addf %4, %9 : vector<80x8xf32>
    %c0_13 = arith.constant 0 : index
    %c2 = arith.constant 2 : index
    %c0_14 = arith.constant 0 : index
    %c0_15 = arith.constant 0 : index
    %11 = vector.load %arg1[%c0_13, %c2, %c0_14, %c0_15] : memref<1x9x80x4xf32, #tpu.memory_space<vmem>>, vector<1x1x80x4xf32>
    %12 = vector.shape_cast %11 : vector<1x1x80x4xf32> to vector<80x4xf32>
    %c2_16 = arith.constant 2 : index
    %c0_17 = arith.constant 0 : index
    %c0_18 = arith.constant 0 : index
    %13 = vector.load %arg3[%c2_16, %c0_17, %c0_18] : memref<9x4x8xf32, #tpu.memory_space<vmem>>, vector<1x4x8xf32>
    %14 = vector.shape_cast %13 : vector<1x4x8xf32> to vector<4x8xf32>
    %cst_19 = arith.constant dense<0.000000e+00> : vector<80x8xf32>
    %15 = tpu.matmul %12, %14, %cst_19 {dimension_numbers = #tpu.dot_dimension_numbers<[1], [0], [0], [1], [0, 0, 1, 1], [], []>} : vector<80x4xf32>, vector<4x8xf32>, vector<80x8xf32> -> vector<80x8xf32>
    %16 = arith.addf %10, %15 : vector<80x8xf32>
    %c0_20 = arith.constant 0 : index
    %c3 = arith.constant 3 : index
    %c0_21 = arith.constant 0 : index
    %c0_22 = arith.constant 0 : index
    %17 = vector.load %arg1[%c0_20, %c3, %c0_21, %c0_22] : memref<1x9x80x4xf32, #tpu.memory_space<vmem>>, vector<1x1x80x4xf32>
    %18 = vector.shape_cast %17 : vector<1x1x80x4xf32> to vector<80x4xf32>
    %c3_23 = arith.constant 3 : index
    %c0_24 = arith.constant 0 : index
    %c0_25 = arith.constant 0 : index
    %19 = vector.load %arg3[%c3_23, %c0_24, %c0_25] : memref<9x4x8xf32, #tpu.memory_space<vmem>>, vector<1x4x8xf32>
    %20 = vector.shape_cast %19 : vector<1x4x8xf32> to vector<4x8xf32>
    %cst_26 = arith.constant dense<0.000000e+00> : vector<80x8xf32>
    %21 = tpu.matmul %18, %20, %cst_26 {dimension_numbers = #tpu.dot_dimension_numbers<[1], [0], [0], [1], [0, 0, 1, 1], [], []>} : vector<80x4xf32>, vector<4x8xf32>, vector<80x8xf32> -> vector<80x8xf32>
    %22 = arith.addf %16, %21 : vector<80x8xf32>
    %c0_27 = arith.constant 0 : index
    %c4 = arith.constant 4 : index
    %c0_28 = arith.constant 0 : index
    %c0_29 = arith.constant 0 : index
    %23 = vector.load %arg1[%c0_27, %c4, %c0_28, %c0_29] : memref<1x9x80x4xf32, #tpu.memory_space<vmem>>, vector<1x1x80x4xf32>
    %24 = vector.shape_cast %23 : vector<1x1x80x4xf32> to vector<80x4xf32>
    %c4_30 = arith.constant 4 : index
    %c0_31 = arith.constant 0 : index
    %c0_32 = arith.constant 0 : index
    %25 = vector.load %arg3[%c4_30, %c0_31, %c0_32] : memref<9x4x8xf32, #tpu.memory_space<vmem>>, vector<1x4x8xf32>
    %26 = vector.shape_cast %25 : vector<1x4x8xf32> to vector<4x8xf32>
    %cst_33 = arith.constant dense<0.000000e+00> : vector<80x8xf32>
    %27 = tpu.matmul %24, %26, %cst_33 {dimension_numbers = #tpu.dot_dimension_numbers<[1], [0], [0], [1], [0, 0, 1, 1], [], []>} : vector<80x4xf32>, vector<4x8xf32>, vector<80x8xf32> -> vector<80x8xf32>
    %28 = arith.addf %22, %27 : vector<80x8xf32>
    %c0_34 = arith.constant 0 : index
    %c5 = arith.constant 5 : index
    %c0_35 = arith.constant 0 : index
    %c0_36 = arith.constant 0 : index
    %29 = vector.load %arg1[%c0_34, %c5, %c0_35, %c0_36] : memref<1x9x80x4xf32, #tpu.memory_space<vmem>>, vector<1x1x80x4xf32>
    %30 = vector.shape_cast %29 : vector<1x1x80x4xf32> to vector<80x4xf32>
    %c5_37 = arith.constant 5 : index
    %c0_38 = arith.constant 0 : index
    %c0_39 = arith.constant 0 : index
    %31 = vector.load %arg3[%c5_37, %c0_38, %c0_39] : memref<9x4x8xf32, #tpu.memory_space<vmem>>, vector<1x4x8xf32>
    %32 = vector.shape_cast %31 : vector<1x4x8xf32> to vector<4x8xf32>
    %cst_40 = arith.constant dense<0.000000e+00> : vector<80x8xf32>
    %33 = tpu.matmul %30, %32, %cst_40 {dimension_numbers = #tpu.dot_dimension_numbers<[1], [0], [0], [1], [0, 0, 1, 1], [], []>} : vector<80x4xf32>, vector<4x8xf32>, vector<80x8xf32> -> vector<80x8xf32>
    %34 = arith.addf %28, %33 : vector<80x8xf32>
    %c0_41 = arith.constant 0 : index
    %c6 = arith.constant 6 : index
    %c0_42 = arith.constant 0 : index
    %c0_43 = arith.constant 0 : index
    %35 = vector.load %arg1[%c0_41, %c6, %c0_42, %c0_43] : memref<1x9x80x4xf32, #tpu.memory_space<vmem>>, vector<1x1x80x4xf32>
    %36 = vector.shape_cast %35 : vector<1x1x80x4xf32> to vector<80x4xf32>
    %c6_44 = arith.constant 6 : index
    %c0_45 = arith.constant 0 : index
    %c0_46 = arith.constant 0 : index
    %37 = vector.load %arg3[%c6_44, %c0_45, %c0_46] : memref<9x4x8xf32, #tpu.memory_space<vmem>>, vector<1x4x8xf32>
    %38 = vector.shape_cast %37 : vector<1x4x8xf32> to vector<4x8xf32>
    %cst_47 = arith.constant dense<0.000000e+00> : vector<80x8xf32>
    %39 = tpu.matmul %36, %38, %cst_47 {dimension_numbers = #tpu.dot_dimension_numbers<[1], [0], [0], [1], [0, 0, 1, 1], [], []>} : vector<80x4xf32>, vector<4x8xf32>, vector<80x8xf32> -> vector<80x8xf32>
    %40 = arith.addf %34, %39 : vector<80x8xf32>
    %c0_48 = arith.constant 0 : index
    %c7 = arith.constant 7 : index
    %c0_49 = arith.constant 0 : index
    %c0_50 = arith.constant 0 : index
    %41 = vector.load %arg1[%c0_48, %c7, %c0_49, %c0_50] : memref<1x9x80x4xf32, #tpu.memory_space<vmem>>, vector<1x1x80x4xf32>
    %42 = vector.shape_cast %41 : vector<1x1x80x4xf32> to vector<80x4xf32>
    %c7_51 = arith.constant 7 : index
    %c0_52 = arith.constant 0 : index
    %c0_53 = arith.constant 0 : index
    %43 = vector.load %arg3[%c7_51, %c0_52, %c0_53] : memref<9x4x8xf32, #tpu.memory_space<vmem>>, vector<1x4x8xf32>
    %44 = vector.shape_cast %43 : vector<1x4x8xf32> to vector<4x8xf32>
    %cst_54 = arith.constant dense<0.000000e+00> : vector<80x8xf32>
    %45 = tpu.matmul %42, %44, %cst_54 {dimension_numbers = #tpu.dot_dimension_numbers<[1], [0], [0], [1], [0, 0, 1, 1], [], []>} : vector<80x4xf32>, vector<4x8xf32>, vector<80x8xf32> -> vector<80x8xf32>
    %46 = arith.addf %40, %45 : vector<80x8xf32>
    %c0_55 = arith.constant 0 : index
    %c8 = arith.constant 8 : index
    %c0_56 = arith.constant 0 : index
    %c0_57 = arith.constant 0 : index
    %47 = vector.load %arg1[%c0_55, %c8, %c0_56, %c0_57] : memref<1x9x80x4xf32, #tpu.memory_space<vmem>>, vector<1x1x80x4xf32>
    %48 = vector.shape_cast %47 : vector<1x1x80x4xf32> to vector<80x4xf32>
    %c8_58 = arith.constant 8 : index
    %c0_59 = arith.constant 0 : index
    %c0_60 = arith.constant 0 : index
    %49 = vector.load %arg3[%c8_58, %c0_59, %c0_60] : memref<9x4x8xf32, #tpu.memory_space<vmem>>, vector<1x4x8xf32>
    %50 = vector.shape_cast %49 : vector<1x4x8xf32> to vector<4x8xf32>
    %cst_61 = arith.constant dense<0.000000e+00> : vector<80x8xf32>
    %51 = tpu.matmul %48, %50, %cst_61 {dimension_numbers = #tpu.dot_dimension_numbers<[1], [0], [0], [1], [0, 0, 1, 1], [], []>} : vector<80x4xf32>, vector<4x8xf32>, vector<80x8xf32> -> vector<80x8xf32>
    %52 = arith.addf %46, %51 : vector<80x8xf32>
    %c0_62 = arith.constant 0 : index
    %c0_63 = arith.constant 0 : index
    %53 = vector.load %arg4[%c0_62, %c0_63] : memref<1x8xf32, #tpu.memory_space<vmem>>, vector<1x8xf32>
    %54 = vector.broadcast %53 : vector<1x8xf32> to vector<80x8xf32>
    %55 = arith.addf %52, %54 : vector<80x8xf32>
    %cst_64 = arith.constant 0.000000e+00 : f32
    %56 = vector.broadcast %cst_64 : f32 to vector<80x8xf32>
    %57 = arith.maximumf %55, %56 : vector<80x8xf32>
    %c0_65 = arith.constant 0 : index
    %c0_66 = arith.constant 0 : index
    %58 = vector.load %arg8[%c0_65, %c0_66] : memref<80x1xf32, #tpu.memory_space<vmem>>, vector<80x1xf32>
    %59 = vector.broadcast %58 : vector<80x1xf32> to vector<80x8xf32>
    %60 = arith.mulf %57, %59 : vector<80x8xf32>
    %cst_67 = arith.constant 0.000000e+00 : f32
    %61 = vector.broadcast %cst_67 : f32 to vector<112x8xf32>
    %c0_68 = arith.constant 0 : index
    %c0_69 = arith.constant 0 : index
    %62 = vector.load %arg10[%c0_68, %c0_69] : memref<112x8xf32, #tpu.memory_space<vmem>>, vector<112x8xf32>
    tpu.vector_store %arg10[%c0_68, %c0_69], %61 {strides = array<i32>} : memref<112x8xf32, #tpu.memory_space<vmem>>, vector<112x8xf32>,
    %c16 = arith.constant 16 : index
    %c0_70 = arith.constant 0 : index
    %63 = vector.load %arg10[%c16, %c0_70] : memref<112x8xf32, #tpu.memory_space<vmem>>, vector<80x8xf32>
    tpu.vector_store %arg10[%c16, %c0_70], %60 {strides = array<i32>} : memref<112x8xf32, #tpu.memory_space<vmem>>, vector<80x8xf32>,
    %c5_71 = arith.constant 5 : index
    %c0_72 = arith.constant 0 : index
    %64 = vector.load %arg10[%c5_71, %c0_72] : memref<112x8xf32, #tpu.memory_space<vmem>>, vector<80x8xf32>
    %c0_73 = arith.constant 0 : index
    %c0_74 = arith.constant 0 : index
    %c0_75 = arith.constant 0 : index
    %65 = vector.load %arg5[%c0_73, %c0_74, %c0_75] : memref<9x8x8xf32, #tpu.memory_space<vmem>>, vector<1x8x8xf32>
    %66 = vector.shape_cast %65 : vector<1x8x8xf32> to vector<8x8xf32>
    %cst_76 = arith.constant dense<0.000000e+00> : vector<80x8xf32>
    %67 = tpu.matmul %64, %66, %cst_76 {dimension_numbers = #tpu.dot_dimension_numbers<[1], [0], [0], [1], [0, 0, 1, 1], [], []>} : vector<80x8xf32>, vector<8x8xf32>, vector<80x8xf32> -> vector<80x8xf32>
    %c6_77 = arith.constant 6 : index
    %c0_78 = arith.constant 0 : index
    %68 = vector.load %arg10[%c6_77, %c0_78] : memref<112x8xf32, #tpu.memory_space<vmem>>, vector<80x8xf32>
    %c1_79 = arith.constant 1 : index
    %c0_80 = arith.constant 0 : index
    %c0_81 = arith.constant 0 : index
    %69 = vector.load %arg5[%c1_79, %c0_80, %c0_81] : memref<9x8x8xf32, #tpu.memory_space<vmem>>, vector<1x8x8xf32>
    %70 = vector.shape_cast %69 : vector<1x8x8xf32> to vector<8x8xf32>
    %cst_82 = arith.constant dense<0.000000e+00> : vector<80x8xf32>
    %71 = tpu.matmul %68, %70, %cst_82 {dimension_numbers = #tpu.dot_dimension_numbers<[1], [0], [0], [1], [0, 0, 1, 1], [], []>} : vector<80x8xf32>, vector<8x8xf32>, vector<80x8xf32> -> vector<80x8xf32>
    %72 = arith.addf %67, %71 : vector<80x8xf32>
    %c7_83 = arith.constant 7 : index
    %c0_84 = arith.constant 0 : index
    %73 = vector.load %arg10[%c7_83, %c0_84] : memref<112x8xf32, #tpu.memory_space<vmem>>, vector<80x8xf32>
    %c2_85 = arith.constant 2 : index
    %c0_86 = arith.constant 0 : index
    %c0_87 = arith.constant 0 : index
    %74 = vector.load %arg5[%c2_85, %c0_86, %c0_87] : memref<9x8x8xf32, #tpu.memory_space<vmem>>, vector<1x8x8xf32>
    %75 = vector.shape_cast %74 : vector<1x8x8xf32> to vector<8x8xf32>
    %cst_88 = arith.constant dense<0.000000e+00> : vector<80x8xf32>
    %76 = tpu.matmul %73, %75, %cst_88 {dimension_numbers = #tpu.dot_dimension_numbers<[1], [0], [0], [1], [0, 0, 1, 1], [], []>} : vector<80x8xf32>, vector<8x8xf32>, vector<80x8xf32> -> vector<80x8xf32>
    %77 = arith.addf %72, %76 : vector<80x8xf32>
    %c15 = arith.constant 15 : index
    %c0_89 = arith.constant 0 : index
    %78 = vector.load %arg10[%c15, %c0_89] : memref<112x8xf32, #tpu.memory_space<vmem>>, vector<80x8xf32>
    %c3_90 = arith.constant 3 : index
    %c0_91 = arith.constant 0 : index
    %c0_92 = arith.constant 0 : index
    %79 = vector.load %arg5[%c3_90, %c0_91, %c0_92] : memref<9x8x8xf32, #tpu.memory_space<vmem>>, vector<1x8x8xf32>
    %80 = vector.shape_cast %79 : vector<1x8x8xf32> to vector<8x8xf32>
    %cst_93 = arith.constant dense<0.000000e+00> : vector<80x8xf32>
    %81 = tpu.matmul %78, %80, %cst_93 {dimension_numbers = #tpu.dot_dimension_numbers<[1], [0], [0], [1], [0, 0, 1, 1], [], []>} : vector<80x8xf32>, vector<8x8xf32>, vector<80x8xf32> -> vector<80x8xf32>
    %82 = arith.addf %77, %81 : vector<80x8xf32>
    %c16_94 = arith.constant 16 : index
    %c0_95 = arith.constant 0 : index
    %83 = vector.load %arg10[%c16_94, %c0_95] : memref<112x8xf32, #tpu.memory_space<vmem>>, vector<80x8xf32>
    %c4_96 = arith.constant 4 : index
    %c0_97 = arith.constant 0 : index
    %c0_98 = arith.constant 0 : index
    %84 = vector.load %arg5[%c4_96, %c0_97, %c0_98] : memref<9x8x8xf32, #tpu.memory_space<vmem>>, vector<1x8x8xf32>
    %85 = vector.shape_cast %84 : vector<1x8x8xf32> to vector<8x8xf32>
    %cst_99 = arith.constant dense<0.000000e+00> : vector<80x8xf32>
    %86 = tpu.matmul %83, %85, %cst_99 {dimension_numbers = #tpu.dot_dimension_numbers<[1], [0], [0], [1], [0, 0, 1, 1], [], []>} : vector<80x8xf32>, vector<8x8xf32>, vector<80x8xf32> -> vector<80x8xf32>
    %87 = arith.addf %82, %86 : vector<80x8xf32>
    %c17 = arith.constant 17 : index
    %c0_100 = arith.constant 0 : index
    %88 = vector.load %arg10[%c17, %c0_100] : memref<112x8xf32, #tpu.memory_space<vmem>>, vector<80x8xf32>
    %c5_101 = arith.constant 5 : index
    %c0_102 = arith.constant 0 : index
    %c0_103 = arith.constant 0 : index
    %89 = vector.load %arg5[%c5_101, %c0_102, %c0_103] : memref<9x8x8xf32, #tpu.memory_space<vmem>>, vector<1x8x8xf32>
    %90 = vector.shape_cast %89 : vector<1x8x8xf32> to vector<8x8xf32>
    %cst_104 = arith.constant dense<0.000000e+00> : vector<80x8xf32>
    %91 = tpu.matmul %88, %90, %cst_104 {dimension_numbers = #tpu.dot_dimension_numbers<[1], [0], [0], [1], [0, 0, 1, 1], [], []>} : vector<80x8xf32>, vector<8x8xf32>, vector<80x8xf32> -> vector<80x8xf32>
    %92 = arith.addf %87, %91 : vector<80x8xf32>
    %c25 = arith.constant 25 : index
    %c0_105 = arith.constant 0 : index
    %93 = vector.load %arg10[%c25, %c0_105] : memref<112x8xf32, #tpu.memory_space<vmem>>, vector<80x8xf32>
    %c6_106 = arith.constant 6 : index
    %c0_107 = arith.constant 0 : index
    %c0_108 = arith.constant 0 : index
    %94 = vector.load %arg5[%c6_106, %c0_107, %c0_108] : memref<9x8x8xf32, #tpu.memory_space<vmem>>, vector<1x8x8xf32>
    %95 = vector.shape_cast %94 : vector<1x8x8xf32> to vector<8x8xf32>
    %cst_109 = arith.constant dense<0.000000e+00> : vector<80x8xf32>
    %96 = tpu.matmul %93, %95, %cst_109 {dimension_numbers = #tpu.dot_dimension_numbers<[1], [0], [0], [1], [0, 0, 1, 1], [], []>} : vector<80x8xf32>, vector<8x8xf32>, vector<80x8xf32> -> vector<80x8xf32>
    %97 = arith.addf %92, %96 : vector<80x8xf32>
    %c26 = arith.constant 26 : index
    %c0_110 = arith.constant 0 : index
    %98 = vector.load %arg10[%c26, %c0_110] : memref<112x8xf32, #tpu.memory_space<vmem>>, vector<80x8xf32>
    %c7_111 = arith.constant 7 : index
    %c0_112 = arith.constant 0 : index
    %c0_113 = arith.constant 0 : index
    %99 = vector.load %arg5[%c7_111, %c0_112, %c0_113] : memref<9x8x8xf32, #tpu.memory_space<vmem>>, vector<1x8x8xf32>
    %100 = vector.shape_cast %99 : vector<1x8x8xf32> to vector<8x8xf32>
    %cst_114 = arith.constant dense<0.000000e+00> : vector<80x8xf32>
    %101 = tpu.matmul %98, %100, %cst_114 {dimension_numbers = #tpu.dot_dimension_numbers<[1], [0], [0], [1], [0, 0, 1, 1], [], []>} : vector<80x8xf32>, vector<8x8xf32>, vector<80x8xf32> -> vector<80x8xf32>
    %102 = arith.addf %97, %101 : vector<80x8xf32>
    %c27 = arith.constant 27 : index
    %c0_115 = arith.constant 0 : index
    %103 = vector.load %arg10[%c27, %c0_115] : memref<112x8xf32, #tpu.memory_space<vmem>>, vector<80x8xf32>
    %c8_116 = arith.constant 8 : index
    %c0_117 = arith.constant 0 : index
    %c0_118 = arith.constant 0 : index
    %104 = vector.load %arg5[%c8_116, %c0_117, %c0_118] : memref<9x8x8xf32, #tpu.memory_space<vmem>>, vector<1x8x8xf32>
    %105 = vector.shape_cast %104 : vector<1x8x8xf32> to vector<8x8xf32>
    %cst_119 = arith.constant dense<0.000000e+00> : vector<80x8xf32>
    %106 = tpu.matmul %103, %105, %cst_119 {dimension_numbers = #tpu.dot_dimension_numbers<[1], [0], [0], [1], [0, 0, 1, 1], [], []>} : vector<80x8xf32>, vector<8x8xf32>, vector<80x8xf32> -> vector<80x8xf32>
    %107 = arith.addf %102, %106 : vector<80x8xf32>
    %c0_120 = arith.constant 0 : index
    %c0_121 = arith.constant 0 : index
    %c0_122 = arith.constant 0 : index
    %108 = vector.load %arg2[%c0_120, %c0_121, %c0_122] : memref<1x80x4xf32, #tpu.memory_space<vmem>>, vector<1x80x4xf32>
    %109 = vector.shape_cast %108 : vector<1x80x4xf32> to vector<80x4xf32>
    %c0_123 = arith.constant 0 : index
    %c0_124 = arith.constant 0 : index
    %110 = vector.load %arg7[%c0_123, %c0_124] : memref<4x8xf32, #tpu.memory_space<vmem>>, vector<4x8xf32>
    %cst_125 = arith.constant dense<0.000000e+00> : vector<80x8xf32>
    %111 = tpu.matmul %109, %110, %cst_125 {dimension_numbers = #tpu.dot_dimension_numbers<[1], [0], [0], [1], [0, 0, 1, 1], [], []>} : vector<80x4xf32>, vector<4x8xf32>, vector<80x8xf32> -> vector<80x8xf32>
    %c0_126 = arith.constant 0 : index
    %c0_127 = arith.constant 0 : index
    %112 = vector.load %arg6[%c0_126, %c0_127] : memref<1x8xf32, #tpu.memory_space<vmem>>, vector<1x8xf32>
    %113 = vector.broadcast %112 : vector<1x8xf32> to vector<80x8xf32>
    %114 = arith.addf %107, %113 : vector<80x8xf32>
    %115 = arith.addf %114, %111 : vector<80x8xf32>
    %cst_128 = arith.constant 0.000000e+00 : f32
    %116 = vector.broadcast %cst_128 : f32 to vector<80x8xf32>
    %117 = arith.maximumf %115, %116 : vector<80x8xf32>
    %c0_129 = arith.constant 0 : index
    %c0_130 = arith.constant 0 : index
    %c0_131 = arith.constant 0 : index
    %118 = vector.load %arg9[%c0_129, %c0_130, %c0_131] : memref<1x80x8xf32, #tpu.memory_space<vmem>>, vector<1x80x8xf32>
    %119 = vector.shape_cast %118 : vector<1x80x8xf32> to vector<80x8xf32>
    %120 = vector.shape_cast %117 : vector<80x8xf32> to vector<1x80x8xf32>
    tpu.vector_store %arg9[%c0_129, %c0_130, %c0_131], %120 {strides = array<i32>} : memref<1x80x8xf32, #tpu.memory_space<vmem>>, vector<1x80x8xf32>,
    return
  }
  func.func @transform_0(%arg0: i32) -> (i32, i32, i32, i32) {
    %c0_i32 = arith.constant 0 : i32
    %c0_i32_0 = arith.constant 0 : i32
    %c0_i32_1 = arith.constant 0 : i32
    %c0_i32_2 = arith.constant 0 : i32
    return %arg0, %c0_i32, %c0_i32_0, %c0_i32_1 : i32, i32, i32, i32
  }
  func.func @transform_1(%arg0: i32) -> (i32, i32, i32) {
    %c0_i32 = arith.constant 0 : i32
    %c0_i32_0 = arith.constant 0 : i32
    %c0_i32_1 = arith.constant 0 : i32
    return %arg0, %c0_i32, %c0_i32_0 : i32, i32, i32
  }
  func.func @transform_2(%arg0: i32) -> (i32, i32, i32) {
    %c0_i32 = arith.constant 0 : i32
    %c0_i32_0 = arith.constant 0 : i32
    %c0_i32_1 = arith.constant 0 : i32
    %c0_i32_2 = arith.constant 0 : i32
    return %c0_i32, %c0_i32_0, %c0_i32_1 : i32, i32, i32
  }
  func.func @transform_3(%arg0: i32) -> (i32, i32) {
    %c0_i32 = arith.constant 0 : i32
    %c0_i32_0 = arith.constant 0 : i32
    %c0_i32_1 = arith.constant 0 : i32
    return %c0_i32, %c0_i32_0 : i32, i32
  }
  func.func @transform_4(%arg0: i32) -> (i32, i32, i32) {
    %c0_i32 = arith.constant 0 : i32
    %c0_i32_0 = arith.constant 0 : i32
    %c0_i32_1 = arith.constant 0 : i32
    %c0_i32_2 = arith.constant 0 : i32
    return %c0_i32, %c0_i32_0, %c0_i32_1 : i32, i32, i32
  }
  func.func @transform_5(%arg0: i32) -> (i32, i32) {
    %c0_i32 = arith.constant 0 : i32
    %c0_i32_0 = arith.constant 0 : i32
    %c0_i32_1 = arith.constant 0 : i32
    return %c0_i32, %c0_i32_0 : i32, i32
  }
  func.func @transform_6(%arg0: i32) -> (i32, i32) {
    %c0_i32 = arith.constant 0 : i32
    %c0_i32_0 = arith.constant 0 : i32
    %c0_i32_1 = arith.constant 0 : i32
    return %c0_i32, %c0_i32_0 : i32, i32
  }
  func.func @transform_7(%arg0: i32) -> (i32, i32) {
    %c0_i32 = arith.constant 0 : i32
    %c0_i32_0 = arith.constant 0 : i32
    %c0_i32_1 = arith.constant 0 : i32
    return %c0_i32, %c0_i32_0 : i32, i32
  }
  func.func @transform_8(%arg0: i32) -> (i32, i32, i32) {
    %c0_i32 = arith.constant 0 : i32
    %c0_i32_0 = arith.constant 0 : i32
    %c0_i32_1 = arith.constant 0 : i32
    return %arg0, %c0_i32, %c0_i32_0 : i32, i32, i32
  }
}

</mosaic_0001>

<llo_original>
// kernel: basic_block_forward.1
$region0: #{basic_block_forward.1}
  #allocation0 [shape = 'u32[]', space=smem, size = 0x4, offset = 0x4, fixed_abs, tag = 'smem constant byte address 0x4 - core index']
  #allocation1 [shape = 'u32[72,128]{1,0:T(1,128)}', space=vmem, size = 0x9000, scoped, tag = 'internal scratch']
  #allocation2 [shape = 'f32[112,8]{1,0:T(8,128)}', space=vmem, size = 0xe000, scoped, tag = 'scratch operand']
  %s0 = inlined_call_operand.vmem [shape: f32[2,9,80,4], index: 0, kind: input, shape index: {}]
  %s1 = inlined_call_operand.vmem [shape: f32[2,80,4], index: 1, kind: input, shape index: {}]
  %s2 = inlined_call_operand.vmem [shape: f32[9,4,8], index: 2, kind: input, shape index: {}]
  %s3 = inlined_call_operand.vmem [shape: f32[1,8], index: 3, kind: input, shape index: {}]
  %s4 = inlined_call_operand.vmem [shape: f32[9,8,8], index: 4, kind: input, shape index: {}]
  %s5 = inlined_call_operand.vmem [shape: f32[1,8], index: 5, kind: input, shape index: {}]
  %s6 = inlined_call_operand.vmem [shape: f32[4,8], index: 6, kind: input, shape index: {}]
  %s7 = inlined_call_operand.vmem [shape: f32[80,1], index: 7, kind: input, shape index: {}]
  %s8 = inlined_call_operand.vmem [shape: f32[2,80,8], index: 8, kind: output, shape index: {}]
  %s9 = sld [smem:[#allocation0]]
  $region65: #{basic_block_forward.1} parent=0
    _
  %s11 = ssub.s32 1, %s9
  %s12 = scalar_select 0, %s11, %s9
  loop: start=0, step=1, limit=4
  $region2: #{basic_block_forward.1} parent=0 // loop_pre_header
    _
  $region3: #{basic_block_forward.1} parent=0 // loop_header
    %s14 = sphi 0, %s18
    %p15 = scmp.ge.s32.totalorder %s14, 4
    %s24 = sphi 0, %s26
    %s27 = sphi 0, %s24
    %s28 = sphi 0, %s27
    %s44 = sphi 0, %s28
    %s50 = sphi 0, %s52
    %s53 = sphi 0, %s50
    %s54 = sphi 0, %s53
    %s70 = sphi 0, %s54
    %s74 = sphi 0, %s74
    %s76 = sphi 0, %s74
    %s77 = sphi 0, %s76
    %s91 = sphi 0, %s77
    %s95 = sphi 0, %s95
    %s97 = sphi 0, %s95
    %s98 = sphi 0, %s97
    %s112 = sphi 0, %s98
    %s116 = sphi 0, %s116
    %s118 = sphi 0, %s116
    %s119 = sphi 0, %s118
    %s133 = sphi 0, %s119
    %s137 = sphi 0, %s137
    %s139 = sphi 0, %s137
    %s140 = sphi 0, %s139
    %s154 = sphi 0, %s140
    %s158 = sphi 0, %s158
    %s160 = sphi 0, %s158
    %s161 = sphi 0, %s160
    %s175 = sphi 0, %s161
    %s179 = sphi 0, %s179
    %s181 = sphi 0, %s179
    %s182 = sphi 0, %s181
    %s196 = sphi 0, %s182
    %s202 = sphi 0, %s204
    %s205 = sphi 0, %s202
    %s206 = sphi 0, %s205
    %s222 = sphi 0, %s206
  $region4: #{basic_block_forward.1} parent=0 // loop_header_branch
    %17 = sbr.rel (%p15) target = $region8
  $region5: #{basic_block_forward.1} parent=0 // loop_body
    %s19 = ssub.s32 %s14, 1
    %s20 = ssub.s32 %s14, 2
    %s21 = sadd.s32 %s14, 1
    %s22 = ssub.s32 %s14, %s21
    %p23 = scmp.eq.s32.totalorder %s22, 0
    %s25 = sadd.s32 %s24, 1
    %s26 = scalar_select %p23, %s24, %s25
    %p29 = pneg %p23
    %p30 = scmp.eq.s32.totalorder %s14, 1
    %p31 = por %p29, %p30
    %p32 = scmp.ne.s32.totalorder %s24, %s27
    %p33 = scmp.eq.s32.totalorder %s14, 0
    %p34 = por %p32, %p33
    %p35 = scmp.ne.s32.totalorder %s24, %s27
    %p36 = scmp.eq.s32.totalorder %s19, 1
    %p37 = por %p35, %p36
    %p38 = scmp.ne.s32.totalorder %s27, %s28
    %p39 = scmp.eq.s32.totalorder %s19, 0
    %p40 = por %p38, %p39
    %p41 = scmp.ne.s32.totalorder %s27, %s28
    %p42 = scmp.eq.s32.totalorder %s20, 1
    %p43 = por %p41, %p42
    %p45 = scmp.ne.s32.totalorder %s28, %s44
    %p46 = scmp.eq.s32.totalorder %s20, 0
    %p47 = por %p45, %p46
    %s48 = ssub.s32 %s14, %s21
    %p49 = scmp.eq.s32.totalorder %s48, 0
    %s51 = sadd.s32 %s50, 1
    %s52 = scalar_select %p49, %s50, %s51
    %p55 = pneg %p49
    %p56 = scmp.eq.s32.totalorder %s14, 1
    %p57 = por %p55, %p56
    %p58 = scmp.ne.s32.totalorder %s50, %s53
    %p59 = scmp.eq.s32.totalorder %s14, 0
    %p60 = por %p58, %p59
    %p61 = scmp.ne.s32.totalorder %s50, %s53
    %p62 = scmp.eq.s32.totalorder %s19, 1
    %p63 = por %p61, %p62
    %p64 = scmp.ne.s32.totalorder %s53, %s54
    %p65 = scmp.eq.s32.totalorder %s19, 0
    %p66 = por %p64, %p65
    %p67 = scmp.ne.s32.totalorder %s53, %s54
    %p68 = scmp.eq.s32.totalorder %s20, 1
    %p69 = por %p67, %p68
    %p71 = scmp.ne.s32.totalorder %s54, %s70
    %p72 = scmp.eq.s32.totalorder %s20, 0
    %p73 = por %p71, %p72
    %s75 = sadd.s32 %s74, 1
    %p78 = scmp.eq.s32.totalorder %s14, 1
    %p79 = scmp.ne.s32.totalorder %s74, %s76
    %p80 = scmp.eq.s32.totalorder %s14, 0
    %p81 = por %p79, %p80
    %p82 = scmp.ne.s32.totalorder %s74, %s76
    %p83 = scmp.eq.s32.totalorder %s19, 1
    %p84 = por %p82, %p83
    %p85 = scmp.ne.s32.totalorder %s76, %s77
    %p86 = scmp.eq.s32.totalorder %s19, 0
    %p87 = por %p85, %p86
    %p88 = scmp.ne.s32.totalorder %s76, %s77
    %p89 = scmp.eq.s32.totalorder %s20, 1
    %p90 = por %p88, %p89
    %p92 = scmp.ne.s32.totalorder %s77, %s91
    %p93 = scmp.eq.s32.totalorder %s20, 0
    %p94 = por %p92, %p93
    %s96 = sadd.s32 %s95, 1
    %p99 = scmp.eq.s32.totalorder %s14, 1
    %p100 = scmp.ne.s32.totalorder %s95, %s97
    %p101 = scmp.eq.s32.totalorder %s14, 0
    %p102 = por %p100, %p101
    %p103 = scmp.ne.s32.totalorder %s95, %s97
    %p104 = scmp.eq.s32.totalorder %s19, 1
    %p105 = por %p103, %p104
    %p106 = scmp.ne.s32.totalorder %s97, %s98
    %p107 = scmp.eq.s32.totalorder %s19, 0
    %p108 = por %p106, %p107
    %p109 = scmp.ne.s32.totalorder %s97, %s98
    %p110 = scmp.eq.s32.totalorder %s20, 1
    %p111 = por %p109, %p110
    %p113 = scmp.ne.s32.totalorder %s98, %s112
    %p114 = scmp.eq.s32.totalorder %s20, 0
    %p115 = por %p113, %p114
    %s117 = sadd.s32 %s116, 1
    %p120 = scmp.eq.s32.totalorder %s14, 1
    %p121 = scmp.ne.s32.totalorder %s116, %s118
    %p122 = scmp.eq.s32.totalorder %s14, 0
    %p123 = por %p121, %p122
    %p124 = scmp.ne.s32.totalorder %s116, %s118
    %p125 = scmp.eq.s32.totalorder %s19, 1
    %p126 = por %p124, %p125
    %p127 = scmp.ne.s32.totalorder %s118, %s119
    %p128 = scmp.eq.s32.totalorder %s19, 0
    %p129 = por %p127, %p128
    %p130 = scmp.ne.s32.totalorder %s118, %s119
    %p131 = scmp.eq.s32.totalorder %s20, 1
    %p132 = por %p130, %p131
    %p134 = scmp.ne.s32.totalorder %s119, %s133
    %p135 = scmp.eq.s32.totalorder %s20, 0
    %p136 = por %p134, %p135
    %s138 = sadd.s32 %s137, 1
    %p141 = scmp.eq.s32.totalorder %s14, 1
    %p142 = scmp.ne.s32.totalorder %s137, %s139
    %p143 = scmp.eq.s32.totalorder %s14, 0
    %p144 = por %p142, %p143
    %p145 = scmp.ne.s32.totalorder %s137, %s139
    %p146 = scmp.eq.s32.totalorder %s19, 1
    %p147 = por %p145, %p146
    %p148 = scmp.ne.s32.totalorder %s139, %s140
    %p149 = scmp.eq.s32.totalorder %s19, 0
    %p150 = por %p148, %p149
    %p151 = scmp.ne.s32.totalorder %s139, %s140
    %p152 = scmp.eq.s32.totalorder %s20, 1
    %p153 = por %p151, %p152
    %p155 = scmp.ne.s32.totalorder %s140, %s154
    %p156 = scmp.eq.s32.totalorder %s20, 0
    %p157 = por %p155, %p156
    %s159 = sadd.s32 %s158, 1
    %p162 = scmp.eq.s32.totalorder %s14, 1
    %p163 = scmp.ne.s32.totalorder %s158, %s160
    %p164 = scmp.eq.s32.totalorder %s14, 0
    %p165 = por %p163, %p164
    %p166 = scmp.ne.s32.totalorder %s158, %s160
    %p167 = scmp.eq.s32.totalorder %s19, 1
    %p168 = por %p166, %p167
    %p169 = scmp.ne.s32.totalorder %s160, %s161
    %p170 = scmp.eq.s32.totalorder %s19, 0
    %p171 = por %p169, %p170
    %p172 = scmp.ne.s32.totalorder %s160, %s161
    %p173 = scmp.eq.s32.totalorder %s20, 1
    %p174 = por %p172, %p173
    %p176 = scmp.ne.s32.totalorder %s161, %s175
    %p177 = scmp.eq.s32.totalorder %s20, 0
    %p178 = por %p176, %p177
    %s180 = sadd.s32 %s179, 1
    %p183 = scmp.eq.s32.totalorder %s14, 1
    %p184 = scmp.ne.s32.totalorder %s179, %s181
    %p185 = scmp.eq.s32.totalorder %s14, 0
    %p186 = por %p184, %p185
    %p187 = scmp.ne.s32.totalorder %s179, %s181
    %p188 = scmp.eq.s32.totalorder %s19, 1
    %p189 = por %p187, %p188
    %p190 = scmp.ne.s32.totalorder %s181, %s182
    %p191 = scmp.eq.s32.totalorder %s19, 0
    %p192 = por %p190, %p191
    %p193 = scmp.ne.s32.totalorder %s181, %s182
    %p194 = scmp.eq.s32.totalorder %s20, 1
    %p195 = por %p193, %p194
    %p197 = scmp.ne.s32.totalorder %s182, %s196
    %p198 = scmp.eq.s32.totalorder %s20, 0
    %p199 = por %p197, %p198
    %s200 = ssub.s32 %s14, %s21
    %p201 = scmp.eq.s32.totalorder %s200, 0
    %s203 = sadd.s32 %s202, 1
    %s204 = scalar_select %p201, %s202, %s203
    %p207 = pneg %p201
    %p208 = scmp.eq.s32.totalorder %s14, 1
    %p209 = por %p207, %p208
    %p210 = scmp.ne.s32.totalorder %s202, %s205
    %p211 = scmp.eq.s32.totalorder %s14, 0
    %p212 = por %p210, %p211
    %p213 = scmp.ne.s32.totalorder %s202, %s205
    %p214 = scmp.eq.s32.totalorder %s19, 1
    %p215 = por %p213, %p214
    %p216 = scmp.ne.s32.totalorder %s205, %s206
    %p217 = scmp.eq.s32.totalorder %s19, 0
    %p218 = por %p216, %p217
    %p219 = scmp.ne.s32.totalorder %s205, %s206
    %p220 = scmp.eq.s32.totalorder %s20, 1
    %p221 = por %p219, %p220
    %p223 = scmp.ne.s32.totalorder %s206, %s222
    %p224 = scmp.eq.s32.totalorder %s20, 0
    %p225 = por %p223, %p224
    %p226 = scmp.le.s32.totalorder 1, %s14
    %p227 = scmp.lt.s32.totalorder %s14, 3
    %p228 = pnand %p226, %p227
    %p229 = pneg %p228
    // Predicated region
    $region9: #{basic_block_forward.1} parent=5 // pred_check
      _
    $region10: #{basic_block_forward.1} parent=5 // pred_check_branch
      %231 = sbr.rel (%p228) target = $region12
    $region11: #{basic_block_forward.1} parent=5 // pred_region
      %s232 = ssub.s32 %s14, 1
      // Predicated region
      $region13: #{basic_block_forward.1} parent=11 // pred_check
        %p233 = pneg %p87
      $region14: #{basic_block_forward.1} parent=11 // pred_check_branch
        %235 = sbr.rel (%p233) target = $region16
      $region15: #{basic_block_forward.1} parent=11 // pred_region
        _
      $region16: #{basic_block_forward.1} parent=11 // pred_fallthru
        _
      // Predicated region
      $region17: #{basic_block_forward.1} parent=11 // pred_check
        %p236 = pneg %p108
      $region18: #{basic_block_forward.1} parent=11 // pred_check_branch
        %238 = sbr.rel (%p236) target = $region20
      $region19: #{basic_block_forward.1} parent=11 // pred_region
        _
      $region20: #{basic_block_forward.1} parent=11 // pred_fallthru
        _
      // Predicated region
      $region21: #{basic_block_forward.1} parent=11 // pred_check
        %p239 = pneg %p129
      $region22: #{basic_block_forward.1} parent=11 // pred_check_branch
        %241 = sbr.rel (%p239) target = $region24
      $region23: #{basic_block_forward.1} parent=11 // pred_region
        _
      $region24: #{basic_block_forward.1} parent=11 // pred_fallthru
        _
      // Predicated region
      $region25: #{basic_block_forward.1} parent=11 // pred_check
        %p242 = pneg %p150
      $region26: #{basic_block_forward.1} parent=11 // pred_check_branch
        %244 = sbr.rel (%p242) target = $region28
      $region27: #{basic_block_forward.1} parent=11 // pred_region
        _
      $region28: #{basic_block_forward.1} parent=11 // pred_fallthru
        _
      // Predicated region
      $region29: #{basic_block_forward.1} parent=11 // pred_check
        %p245 = pneg %p171
      $region30: #{basic_block_forward.1} parent=11 // pred_check_branch
        %247 = sbr.rel (%p245) target = $region32
      $region31: #{basic_block_forward.1} parent=11 // pred_region
        _
      $region32: #{basic_block_forward.1} parent=11 // pred_fallthru
        _
      // Predicated region
      $region33: #{basic_block_forward.1} parent=11 // pred_check
        %p248 = pneg %p192
      $region34: #{basic_block_forward.1} parent=11 // pred_check_branch
        %250 = sbr.rel (%p248) target = $region36
      $region35: #{basic_block_forward.1} parent=11 // pred_region
        _
      $region36: #{basic_block_forward.1} parent=11 // pred_fallthru
        _
    $region12: #{basic_block_forward.1} parent=5 // pred_fallthru
      _
    %p251 = scmp.lt.s32.totalorder %s14, 2
    // Predicated region
    $region37: #{basic_block_forward.1} parent=5 // pred_check
      %p252 = pneg %p251
    $region38: #{basic_block_forward.1} parent=5 // pred_check_branch
      %254 = sbr.rel (%p252) target = $region40
    $region39: #{basic_block_forward.1} parent=5 // pred_region
      // Predicated region
      $region41: #{basic_block_forward.1} parent=39 // pred_check
        %p255 = pneg %p34
      $region42: #{basic_block_forward.1} parent=39 // pred_check_branch
        %257 = sbr.rel (%p255) target = $region44
      $region43: #{basic_block_forward.1} parent=39 // pred_region
        %p258 = scmp.lt.s32.totalorder %s14, 1
        %s259 = scalar_select %p258, %s14, 1
        %s260 = smul.addr %s259, 90
        %s261 = smul.addr %s260, 8
        %s262 = scalar_lea.vmem %s0, %s261
      $region44: #{basic_block_forward.1} parent=39 // pred_fallthru
        _
      // Predicated region
      $region45: #{basic_block_forward.1} parent=39 // pred_check
        %p263 = pneg %p60
      $region46: #{basic_block_forward.1} parent=39 // pred_check_branch
        %265 = sbr.rel (%p263) target = $region48
      $region47: #{basic_block_forward.1} parent=39 // pred_region
        %p266 = scmp.lt.s32.totalorder %s14, 1
        %s267 = scalar_select %p266, %s14, 1
        %s268 = smul.addr %s267, 10
        %s269 = smul.addr %s268, 8
        %s270 = scalar_lea.vmem %s1, %s269
      $region48: #{basic_block_forward.1} parent=39 // pred_fallthru
        _
    $region40: #{basic_block_forward.1} parent=5 // pred_fallthru
      _
    %p271 = scmp.le.s32.totalorder 1, %s14
    %p272 = scmp.lt.s32.totalorder %s14, 3
    %p273 = pnand %p271, %p272
    %p274 = pneg %p273
    // Predicated region
    $region49: #{basic_block_forward.1} parent=5 // pred_check
      _
    $region50: #{basic_block_forward.1} parent=5 // pred_check_branch
      %276 = sbr.rel (%p273) target = $region52
    $region51: #{basic_block_forward.1} parent=5 // pred_region
      %s277 = ssub.s32 %s14, 1
      %p278 = scmp.lt.s32.totalorder %s19, 1
      %s279 = scalar_select %p278, %s19, 1
      %s280 = smul.addr %s279, 90
      %s281 = smul.addr %s280, 8
      %s282 = scalar_lea.vmem %s0, %s281
      %p283 = pneg %p40
      %p284 = pneg %p37
      %p285 = scmp.lt.s32.totalorder %s19, 1
      %s286 = scalar_select %p285, %s19, 1
      %s287 = smul.addr %s286, 10
      %s288 = smul.addr %s287, 8
      %s289 = scalar_lea.vmem %s1, %s288
      %p290 = pneg %p66
      %p291 = pneg %p63
      %p292 = pneg %p87
      %p293 = pneg %p84
      %p294 = pneg %p108
      %p295 = pneg %p105
      %p296 = pneg %p129
      %p297 = pneg %p126
      %p298 = pneg %p150
      %p299 = pneg %p147
      %p300 = pneg %p171
      %p301 = pneg %p168
      %p302 = pneg %p192
      %p303 = pneg %p189
      %p304 = pneg %p218
      %p305 = pneg %p215
      %p306 = scmp.lt.s32.totalorder %s19, 1
      %s307 = scalar_select %p306, %s19, 1
      %s308 = smul.addr %s307, 10
      %s309 = smul.addr %s308, 8
      %s310 = scalar_lea.vmem %s8, %s309
      %p311 = scmp.lt.s32.totalorder %s19, 1
      %s312 = scalar_select %p311, %s19, 1
      %s313 = smul.addr %s312, 90
      %s314 = smul.addr %s313, 8
      %s315 = scalar_lea.vmem %s0, %s314
      %p316 = scmp.lt.s32.totalorder %s19, 1
      %s317 = scalar_select %p316, %s19, 1
      %s318 = smul.addr %s317, 10
      %s319 = smul.addr %s318, 8
      %s320 = scalar_lea.vmem %s1, %s319
      %p321 = scmp.lt.s32.totalorder %s19, 1
      %s322 = scalar_select %p321, %s19, 1
      %s323 = smul.addr %s322, 10
      %s324 = smul.addr %s323, 8
      %s325 = scalar_lea.vmem %s8, %s324
      %v326 = vld [vmem:[%s315] sm:$0xff]
      %v327 = vld [vmem:[%s315 + $0x8] sm:$0xff]
      %v328 = vld [vmem:[%s315 + $0x10] sm:$0xff]
      %v329 = vld [vmem:[%s315 + $0x18] sm:$0xff]
      %v330 = vld [vmem:[%s315 + $0x20] sm:$0xff]
      %v331 = vld [vmem:[%s315 + $0x28] sm:$0xff]
      %v332 = vld [vmem:[%s315 + $0x30] sm:$0xff]
      %v333 = vld [vmem:[%s315 + $0x38] sm:$0xff]
      %v334 = vld [vmem:[%s315 + $0x40] sm:$0xff]
      %v335 = vld [vmem:[%s315 + $0x48] sm:$0xff]
      %v336 = vld [vmem:[%s2] sm:$0xf]
      %s337 = scalar_lea.vmem %s315, 80
      %v338 = vld [vmem:[%s337] sm:$0xff]
      %v339 = vld [vmem:[%s337 + $0x8] sm:$0xff]
      %v340 = vld [vmem:[%s337 + $0x10] sm:$0xff]
      %v341 = vld [vmem:[%s337 + $0x18] sm:$0xff]
      %v342 = vld [vmem:[%s337 + $0x20] sm:$0xff]
      %v343 = vld [vmem:[%s337 + $0x28] sm:$0xff]
      %v344 = vld [vmem:[%s337 + $0x30] sm:$0xff]
      %v345 = vld [vmem:[%s337 + $0x38] sm:$0xff]
      %v346 = vld [vmem:[%s337 + $0x40] sm:$0xff]
      %v347 = vld [vmem:[%s337 + $0x48] sm:$0xff]
      %s348 = scalar_lea.vmem %s2, 4
      %v349 = vld [vmem:[%s348] sm:$0xf]
      %vm350 = vcmask 31744
      %v352 = vsel %vm350, %v338, 0
      %v355 = vsel %vm350, %v339, 0
      %v358 = vsel %vm350, %v340, 0
      %v361 = vsel %vm350, %v341, 0
      %v364 = vsel %vm350, %v342, 0
      %v367 = vsel %vm350, %v343, 0
      %v370 = vsel %vm350, %v344, 0
      %v373 = vsel %vm350, %v345, 0
      %v376 = vsel %vm350, %v346, 0
      %v379 = vsel %vm350, %v347, 0
      %vm381 = vcmask 1043456
      %v383 = vsel %vm381, %v349, 0
      %385 = vmatpush.msra.mxu0 0.0
      %386 = vmatpush.msra.mxu0 0.0
      %387 = vmatpush.msra.mxu0 0.0
      %388 = vmatpush.msra.mxu0 0.0
      %389 = vmatpush.msra.mxu0 0.0
      %390 = vmatpush.msra.mxu0 0.0
      %391 = vmatpush.msra.mxu0 0.0
      %392 = vmatpush.msra.mxu0 0.0
      %393 = vmatpush.msra.mxu0 0.0
      %394 = vmatpush.msra.mxu0 0.0
      %395 = vmatpush.msra.mxu0 0.0
      %396 = vmatpush.msra.mxu0 0.0
      %397 = vmatpush.msra.mxu0 0.0
      %398 = vmatpush.msra.mxu0 0.0
      %399 = vmatpush.msra.mxu0 0.0
      %400 = vmatpush.msra.mxu0 %v383
      %401 = vmatmul.f32.gmra.mxu0 %v352
      %v402 = vpop.f32.mrf.mxu0
      %v403 = vadd.f32 0.0, %v402
      %404 = vmatmul.f32.gmra.mxu0 %v355
      %v405 = vpop.f32.mrf.mxu0
      %v406 = vadd.f32 0.0, %v405
      %407 = vmatmul.f32.gmra.mxu0 %v358
      %v408 = vpop.f32.mrf.mxu0
      %v409 = vadd.f32 0.0, %v408
      %410 = vmatmul.f32.gmra.mxu0 %v361
      %v411 = vpop.f32.mrf.mxu0
      %v412 = vadd.f32 0.0, %v411
      %413 = vmatmul.f32.gmra.mxu0 %v364
      %v414 = vpop.f32.mrf.mxu0
      %v415 = vadd.f32 0.0, %v414
      %416 = vmatmul.f32.gmra.mxu0 %v367
      %v417 = vpop.f32.mrf.mxu0
      %v418 = vadd.f32 0.0, %v417
      %419 = vmatmul.f32.gmra.mxu0 %v370
      %v420 = vpop.f32.mrf.mxu0
      %v421 = vadd.f32 0.0, %v420
      %422 = vmatmul.f32.gmra.mxu0 %v373
      %v423 = vpop.f32.mrf.mxu0
      %v424 = vadd.f32 0.0, %v423
      %425 = vmatmul.f32.gmra.mxu0 %v376
      %v426 = vpop.f32.mrf.mxu0
      %v427 = vadd.f32 0.0, %v426
      %428 = vmatmul.f32.gmra.mxu0 %v379
      %v429 = vpop.f32.mrf.mxu0
      %v430 = vadd.f32 0.0, %v429
      %431 = vdwg.mxu0
      %v433 = vsel %vm350, %v326, 0
      %v436 = vsel %vm350, %v327, 0
      %v439 = vsel %vm350, %v328, 0
      %v442 = vsel %vm350, %v329, 0
      %v445 = vsel %vm350, %v330, 0
      %v448 = vsel %vm350, %v331, 0
      %v451 = vsel %vm350, %v332, 0
      %v454 = vsel %vm350, %v333, 0
      %v457 = vsel %vm350, %v334, 0
      %v460 = vsel %vm350, %v335, 0
      %v463 = vsel %vm381, %v336, 0
      %465 = vmatpush.msra.mxu0 0.0
      %466 = vmatpush.msra.mxu0 0.0
      %467 = vmatpush.msra.mxu0 0.0
      %468 = vmatpush.msra.mxu0 0.0
      %469 = vmatpush.msra.mxu0 0.0
      %470 = vmatpush.msra.mxu0 0.0
      %471 = vmatpush.msra.mxu0 0.0
      %472 = vmatpush.msra.mxu0 0.0
      %473 = vmatpush.msra.mxu0 0.0
      %474 = vmatpush.msra.mxu0 0.0
      %475 = vmatpush.msra.mxu0 0.0
      %476 = vmatpush.msra.mxu0 0.0
      %477 = vmatpush.msra.mxu0 0.0
      %478 = vmatpush.msra.mxu0 0.0
      %479 = vmatpush.msra.mxu0 0.0
      %480 = vmatpush.msra.mxu0 %v463
      %481 = vmatmul.f32.gmra.mxu0 %v433
      %v482 = vpop.f32.mrf.mxu0
      %v483 = vadd.f32 %v403, %v482
      %484 = vmatmul.f32.gmra.mxu0 %v436
      %v485 = vpop.f32.mrf.mxu0
      %v486 = vadd.f32 %v406, %v485
      %487 = vmatmul.f32.gmra.mxu0 %v439
      %v488 = vpop.f32.mrf.mxu0
      %v489 = vadd.f32 %v409, %v488
      %490 = vmatmul.f32.gmra.mxu0 %v442
      %v491 = vpop.f32.mrf.mxu0
      %v492 = vadd.f32 %v412, %v491
      %493 = vmatmul.f32.gmra.mxu0 %v445
      %v494 = vpop.f32.mrf.mxu0
      %v495 = vadd.f32 %v415, %v494
      %496 = vmatmul.f32.gmra.mxu0 %v448
      %v497 = vpop.f32.mrf.mxu0
      %v498 = vadd.f32 %v418, %v497
      %499 = vmatmul.f32.gmra.mxu0 %v451
      %v500 = vpop.f32.mrf.mxu0
      %v501 = vadd.f32 %v421, %v500
      %502 = vmatmul.f32.gmra.mxu0 %v454
      %v503 = vpop.f32.mrf.mxu0
      %v504 = vadd.f32 %v424, %v503
      %505 = vmatmul.f32.gmra.mxu0 %v457
      %v506 = vpop.f32.mrf.mxu0
      %v507 = vadd.f32 %v427, %v506
      %508 = vmatmul.f32.gmra.mxu0 %v460
      %v509 = vpop.f32.mrf.mxu0
      %v510 = vadd.f32 %v430, %v509
      %511 = vdwg.mxu0
      %s512 = scalar_lea.vmem %s315, 160
      %v513 = vld [vmem:[%s512] sm:$0xff]
      %v514 = vld [vmem:[%s512 + $0x8] sm:$0xff]
      %v515 = vld [vmem:[%s512 + $0x10] sm:$0xff]
      %v516 = vld [vmem:[%s512 + $0x18] sm:$0xff]
      %v517 = vld [vmem:[%s512 + $0x20] sm:$0xff]
      %v518 = vld [vmem:[%s512 + $0x28] sm:$0xff]
      %v519 = vld [vmem:[%s512 + $0x30] sm:$0xff]
      %v520 = vld [vmem:[%s512 + $0x38] sm:$0xff]
      %v521 = vld [vmem:[%s512 + $0x40] sm:$0xff]
      %v522 = vld [vmem:[%s512 + $0x48] sm:$0xff]
      %s523 = scalar_lea.vmem %s2, 8
      %v524 = vld [vmem:[%s523] sm:$0xf]
      %v526 = vsel %vm350, %v513, 0
      %v529 = vsel %vm350, %v514, 0
      %v532 = vsel %vm350, %v515, 0
      %v535 = vsel %vm350, %v516, 0
      %v538 = vsel %vm350, %v517, 0
      %v541 = vsel %vm350, %v518, 0
      %v544 = vsel %vm350, %v519, 0
      %v547 = vsel %vm350, %v520, 0
      %v550 = vsel %vm350, %v521, 0
      %v553 = vsel %vm350, %v522, 0
      %v556 = vsel %vm381, %v524, 0
      %558 = vmatpush.msra.mxu0 0.0
      %559 = vmatpush.msra.mxu0 0.0
      %560 = vmatpush.msra.mxu0 0.0
      %561 = vmatpush.msra.mxu0 0.0
      %562 = vmatpush.msra.mxu0 0.0
      %563 = vmatpush.msra.mxu0 0.0
      %564 = vmatpush.msra.mxu0 0.0
      %565 = vmatpush.msra.mxu0 0.0
      %566 = vmatpush.msra.mxu0 0.0
      %567 = vmatpush.msra.mxu0 0.0
      %568 = vmatpush.msra.mxu0 0.0
      %569 = vmatpush.msra.mxu0 0.0
      %570 = vmatpush.msra.mxu0 0.0
      %571 = vmatpush.msra.mxu0 0.0
      %572 = vmatpush.msra.mxu0 0.0
      %573 = vmatpush.msra.mxu0 %v556
      %574 = vmatmul.f32.gmra.mxu0 %v526
      %v575 = vpop.f32.mrf.mxu0
      %v576 = vadd.f32 0.0, %v575
      %577 = vmatmul.f32.gmra.mxu0 %v529
      %v578 = vpop.f32.mrf.mxu0
      %v579 = vadd.f32 0.0, %v578
      %580 = vmatmul.f32.gmra.mxu0 %v532
      %v581 = vpop.f32.mrf.mxu0
      %v582 = vadd.f32 0.0, %v581
      %583 = vmatmul.f32.gmra.mxu0 %v535
      %v584 = vpop.f32.mrf.mxu0
      %v585 = vadd.f32 0.0, %v584
      %586 = vmatmul.f32.gmra.mxu0 %v538
      %v587 = vpop.f32.mrf.mxu0
      %v588 = vadd.f32 0.0, %v587
      %589 = vmatmul.f32.gmra.mxu0 %v541
      %v590 = vpop.f32.mrf.mxu0
      %v591 = vadd.f32 0.0, %v590
      %592 = vmatmul.f32.gmra.mxu0 %v544
      %v593 = vpop.f32.mrf.mxu0
      %v594 = vadd.f32 0.0, %v593
      %595 = vmatmul.f32.gmra.mxu0 %v547
      %v596 = vpop.f32.mrf.mxu0
      %v597 = vadd.f32 0.0, %v596
      %598 = vmatmul.f32.gmra.mxu0 %v550
      %v599 = vpop.f32.mrf.mxu0
      %v600 = vadd.f32 0.0, %v599
      %601 = vmatmul.f32.gmra.mxu0 %v553
      %v602 = vpop.f32.mrf.mxu0
      %v603 = vadd.f32 0.0, %v602
      %604 = vdwg.mxu0
      %v605 = vadd.f32 %v483, %v576
      %v606 = vadd.f32 %v486, %v579
      %v607 = vadd.f32 %v489, %v582
      %v608 = vadd.f32 %v492, %v585
      %v609 = vadd.f32 %v495, %v588
      %v610 = vadd.f32 %v498, %v591
      %v611 = vadd.f32 %v501, %v594
      %v612 = vadd.f32 %v504, %v597
      %v613 = vadd.f32 %v507, %v600
      %v614 = vadd.f32 %v510, %v603
      %s615 = scalar_lea.vmem %s315, 240
      %v616 = vld [vmem:[%s615] sm:$0xff]
      %v617 = vld [vmem:[%s615 + $0x8] sm:$0xff]
      %v618 = vld [vmem:[%s615 + $0x10] sm:$0xff]
      %v619 = vld [vmem:[%s615 + $0x18] sm:$0xff]
      %v620 = vld [vmem:[%s615 + $0x20] sm:$0xff]
      %v621 = vld [vmem:[%s615 + $0x28] sm:$0xff]
      %v622 = vld [vmem:[%s615 + $0x30] sm:$0xff]
      %v623 = vld [vmem:[%s615 + $0x38] sm:$0xff]
      %v624 = vld [vmem:[%s615 + $0x40] sm:$0xff]
      %v625 = vld [vmem:[%s615 + $0x48] sm:$0xff]
      %s626 = scalar_lea.vmem %s2, 12
      %v627 = vld [vmem:[%s626] sm:$0xf]
      %v629 = vsel %vm350, %v616, 0
      %v632 = vsel %vm350, %v617, 0
      %v635 = vsel %vm350, %v618, 0
      %v638 = vsel %vm350, %v619, 0
      %v641 = vsel %vm350, %v620, 0
      %v644 = vsel %vm350, %v621, 0
      %v647 = vsel %vm350, %v622, 0
      %v650 = vsel %vm350, %v623, 0
      %v653 = vsel %vm350, %v624, 0
      %v656 = vsel %vm350, %v625, 0
      %v659 = vsel %vm381, %v627, 0
      %661 = vmatpush.msra.mxu0 0.0
      %662 = vmatpush.msra.mxu0 0.0
      %663 = vmatpush.msra.mxu0 0.0
      %664 = vmatpush.msra.mxu0 0.0
      %665 = vmatpush.msra.mxu0 0.0
      %666 = vmatpush.msra.mxu0 0.0
      %667 = vmatpush.msra.mxu0 0.0
      %668 = vmatpush.msra.mxu0 0.0
      %669 = vmatpush.msra.mxu0 0.0
      %670 = vmatpush.msra.mxu0 0.0
      %671 = vmatpush.msra.mxu0 0.0
      %672 = vmatpush.msra.mxu0 0.0
      %673 = vmatpush.msra.mxu0 0.0
      %674 = vmatpush.msra.mxu0 0.0
      %675 = vmatpush.msra.mxu0 0.0
      %676 = vmatpush.msra.mxu0 %v659
      %677 = vmatmul.f32.gmra.mxu0 %v629
      %v678 = vpop.f32.mrf.mxu0
      %v679 = vadd.f32 0.0, %v678
      %680 = vmatmul.f32.gmra.mxu0 %v632
      %v681 = vpop.f32.mrf.mxu0
      %v682 = vadd.f32 0.0, %v681
      %683 = vmatmul.f32.gmra.mxu0 %v635
      %v684 = vpop.f32.mrf.mxu0
      %v685 = vadd.f32 0.0, %v684
      %686 = vmatmul.f32.gmra.mxu0 %v638
      %v687 = vpop.f32.mrf.mxu0
      %v688 = vadd.f32 0.0, %v687
      %689 = vmatmul.f32.gmra.mxu0 %v641
      %v690 = vpop.f32.mrf.mxu0
      %v691 = vadd.f32 0.0, %v690
      %692 = vmatmul.f32.gmra.mxu0 %v644
      %v693 = vpop.f32.mrf.mxu0
      %v694 = vadd.f32 0.0, %v693
      %695 = vmatmul.f32.gmra.mxu0 %v647
      %v696 = vpop.f32.mrf.mxu0
      %v697 = vadd.f32 0.0, %v696
      %698 = vmatmul.f32.gmra.mxu0 %v650
      %v699 = vpop.f32.mrf.mxu0
      %v700 = vadd.f32 0.0, %v699
      %701 = vmatmul.f32.gmra.mxu0 %v653
      %v702 = vpop.f32.mrf.mxu0
      %v703 = vadd.f32 0.0, %v702
      %704 = vmatmul.f32.gmra.mxu0 %v656
      %v705 = vpop.f32.mrf.mxu0
      %v706 = vadd.f32 0.0, %v705
      %707 = vdwg.mxu0
      %v708 = vadd.f32 %v605, %v679
      %v709 = vadd.f32 %v606, %v682
      %v710 = vadd.f32 %v607, %v685
      %v711 = vadd.f32 %v608, %v688
      %v712 = vadd.f32 %v609, %v691
      %v713 = vadd.f32 %v610, %v694
      %v714 = vadd.f32 %v611, %v697
      %v715 = vadd.f32 %v612, %v700
      %v716 = vadd.f32 %v613, %v703
      %v717 = vadd.f32 %v614, %v706
      %s718 = scalar_lea.vmem %s315, 320
      %v719 = vld [vmem:[%s718] sm:$0xff]
      %v720 = vld [vmem:[%s718 + $0x8] sm:$0xff]
      %v721 = vld [vmem:[%s718 + $0x10] sm:$0xff]
      %v722 = vld [vmem:[%s718 + $0x18] sm:$0xff]
      %v723 = vld [vmem:[%s718 + $0x20] sm:$0xff]
      %v724 = vld [vmem:[%s718 + $0x28] sm:$0xff]
      %v725 = vld [vmem:[%s718 + $0x30] sm:$0xff]
      %v726 = vld [vmem:[%s718 + $0x38] sm:$0xff]
      %v727 = vld [vmem:[%s718 + $0x40] sm:$0xff]
      %v728 = vld [vmem:[%s718 + $0x48] sm:$0xff]
      %s729 = scalar_lea.vmem %s2, 16
      %v730 = vld [vmem:[%s729] sm:$0xf]
      %v732 = vsel %vm350, %v719, 0
      %v735 = vsel %vm350, %v720, 0
      %v738 = vsel %vm350, %v721, 0
      %v741 = vsel %vm350, %v722, 0
      %v744 = vsel %vm350, %v723, 0
      %v747 = vsel %vm350, %v724, 0
      %v750 = vsel %vm350, %v725, 0
      %v753 = vsel %vm350, %v726, 0
      %v756 = vsel %vm350, %v727, 0
      %v759 = vsel %vm350, %v728, 0
      %v762 = vsel %vm381, %v730, 0
      %764 = vmatpush.msra.mxu0 0.0
      %765 = vmatpush.msra.mxu0 0.0
      %766 = vmatpush.msra.mxu0 0.0
      %767 = vmatpush.msra.mxu0 0.0
      %768 = vmatpush.msra.mxu0 0.0
      %769 = vmatpush.msra.mxu0 0.0
      %770 = vmatpush.msra.mxu0 0.0
      %771 = vmatpush.msra.mxu0 0.0
      %772 = vmatpush.msra.mxu0 0.0
      %773 = vmatpush.msra.mxu0 0.0
      %774 = vmatpush.msra.mxu0 0.0
      %775 = vmatpush.msra.mxu0 0.0
      %776 = vmatpush.msra.mxu0 0.0
      %777 = vmatpush.msra.mxu0 0.0
      %778 = vmatpush.msra.mxu0 0.0
      %779 = vmatpush.msra.mxu0 %v762
      %780 = vmatmul.f32.gmra.mxu0 %v732
      %v781 = vpop.f32.mrf.mxu0
      %v782 = vadd.f32 0.0, %v781
      %783 = vmatmul.f32.gmra.mxu0 %v735
      %v784 = vpop.f32.mrf.mxu0
      %v785 = vadd.f32 0.0, %v784
      %786 = vmatmul.f32.gmra.mxu0 %v738
      %v787 = vpop.f32.mrf.mxu0
      %v788 = vadd.f32 0.0, %v787
      %789 = vmatmul.f32.gmra.mxu0 %v741
      %v790 = vpop.f32.mrf.mxu0
      %v791 = vadd.f32 0.0, %v790
      %792 = vmatmul.f32.gmra.mxu0 %v744
      %v793 = vpop.f32.mrf.mxu0
      %v794 = vadd.f32 0.0, %v793
      %795 = vmatmul.f32.gmra.mxu0 %v747
      %v796 = vpop.f32.mrf.mxu0
      %v797 = vadd.f32 0.0, %v796
      %798 = vmatmul.f32.gmra.mxu0 %v750
      %v799 = vpop.f32.mrf.mxu0
      %v800 = vadd.f32 0.0, %v799
      %801 = vmatmul.f32.gmra.mxu0 %v753
      %v802 = vpop.f32.mrf.mxu0
      %v803 = vadd.f32 0.0, %v802
      %804 = vmatmul.f32.gmra.mxu0 %v756
      %v805 = vpop.f32.mrf.mxu0
      %v806 = vadd.f32 0.0, %v805
      %807 = vmatmul.f32.gmra.mxu0 %v759
      %v808 = vpop.f32.mrf.mxu0
      %v809 = vadd.f32 0.0, %v808
      %810 = vdwg.mxu0
      %v811 = vadd.f32 %v708, %v782
      %v812 = vadd.f32 %v709, %v785
      %v813 = vadd.f32 %v710, %v788
      %v814 = vadd.f32 %v711, %v791
      %v815 = vadd.f32 %v712, %v794
      %v816 = vadd.f32 %v713, %v797
      %v817 = vadd.f32 %v714, %v800
      %v818 = vadd.f32 %v715, %v803
      %v819 = vadd.f32 %v716, %v806
      %v820 = vadd.f32 %v717, %v809
      %s821 = scalar_lea.vmem %s315, 400
      %v822 = vld [vmem:[%s821] sm:$0xff]
      %v823 = vld [vmem:[%s821 + $0x8] sm:$0xff]
      %v824 = vld [vmem:[%s821 + $0x10] sm:$0xff]
      %v825 = vld [vmem:[%s821 + $0x18] sm:$0xff]
      %v826 = vld [vmem:[%s821 + $0x20] sm:$0xff]
      %v827 = vld [vmem:[%s821 + $0x28] sm:$0xff]
      %v828 = vld [vmem:[%s821 + $0x30] sm:$0xff]
      %v829 = vld [vmem:[%s821 + $0x38] sm:$0xff]
      %v830 = vld [vmem:[%s821 + $0x40] sm:$0xff]
      %v831 = vld [vmem:[%s821 + $0x48] sm:$0xff]
      %s832 = scalar_lea.vmem %s2, 20
      %v833 = vld [vmem:[%s832] sm:$0xf]
      %v835 = vsel %vm350, %v822, 0
      %v838 = vsel %vm350, %v823, 0
      %v841 = vsel %vm350, %v824, 0
      %v844 = vsel %vm350, %v825, 0
      %v847 = vsel %vm350, %v826, 0
      %v850 = vsel %vm350, %v827, 0
      %v853 = vsel %vm350, %v828, 0
      %v856 = vsel %vm350, %v829, 0
      %v859 = vsel %vm350, %v830, 0
      %v862 = vsel %vm350, %v831, 0
      %v865 = vsel %vm381, %v833, 0
      %867 = vmatpush.msra.mxu0 0.0
      %868 = vmatpush.msra.mxu0 0.0
      %869 = vmatpush.msra.mxu0 0.0
      %870 = vmatpush.msra.mxu0 0.0
      %871 = vmatpush.msra.mxu0 0.0
      %872 = vmatpush.msra.mxu0 0.0
      %873 = vmatpush.msra.mxu0 0.0
      %874 = vmatpush.msra.mxu0 0.0
      %875 = vmatpush.msra.mxu0 0.0
      %876 = vmatpush.msra.mxu0 0.0
      %877 = vmatpush.msra.mxu0 0.0
      %878 = vmatpush.msra.mxu0 0.0
      %879 = vmatpush.msra.mxu0 0.0
      %880 = vmatpush.msra.mxu0 0.0
      %881 = vmatpush.msra.mxu0 0.0
      %882 = vmatpush.msra.mxu0 %v865
      %883 = vmatmul.f32.gmra.mxu0 %v835
      %v884 = vpop.f32.mrf.mxu0
      %v885 = vadd.f32 0.0, %v884
      %886 = vmatmul.f32.gmra.mxu0 %v838
      %v887 = vpop.f32.mrf.mxu0
      %v888 = vadd.f32 0.0, %v887
      %889 = vmatmul.f32.gmra.mxu0 %v841
      %v890 = vpop.f32.mrf.mxu0
      %v891 = vadd.f32 0.0, %v890
      %892 = vmatmul.f32.gmra.mxu0 %v844
      %v893 = vpop.f32.mrf.mxu0
      %v894 = vadd.f32 0.0, %v893
      %895 = vmatmul.f32.gmra.mxu0 %v847
      %v896 = vpop.f32.mrf.mxu0
      %v897 = vadd.f32 0.0, %v896
      %898 = vmatmul.f32.gmra.mxu0 %v850
      %v899 = vpop.f32.mrf.mxu0
      %v900 = vadd.f32 0.0, %v899
      %901 = vmatmul.f32.gmra.mxu0 %v853
      %v902 = vpop.f32.mrf.mxu0
      %v903 = vadd.f32 0.0, %v902
      %904 = vmatmul.f32.gmra.mxu0 %v856
      %v905 = vpop.f32.mrf.mxu0
      %v906 = vadd.f32 0.0, %v905
      %907 = vmatmul.f32.gmra.mxu0 %v859
      %v908 = vpop.f32.mrf.mxu0
      %v909 = vadd.f32 0.0, %v908
      %910 = vmatmul.f32.gmra.mxu0 %v862
      %v911 = vpop.f32.mrf.mxu0
      %v912 = vadd.f32 0.0, %v911
      %913 = vdwg.mxu0
      %v914 = vadd.f32 %v811, %v885
      %v915 = vadd.f32 %v812, %v888
      %v916 = vadd.f32 %v813, %v891
      %v917 = vadd.f32 %v814, %v894
      %v918 = vadd.f32 %v815, %v897
      %v919 = vadd.f32 %v816, %v900
      %v920 = vadd.f32 %v817, %v903
      %v921 = vadd.f32 %v818, %v906
      %v922 = vadd.f32 %v819, %v909
      %v923 = vadd.f32 %v820, %v912
      %s924 = scalar_lea.vmem %s315, 480
      %v925 = vld [vmem:[%s924] sm:$0xff]
      %v926 = vld [vmem:[%s924 + $0x8] sm:$0xff]
      %v927 = vld [vmem:[%s924 + $0x10] sm:$0xff]
      %v928 = vld [vmem:[%s924 + $0x18] sm:$0xff]
      %v929 = vld [vmem:[%s924 + $0x20] sm:$0xff]
      %v930 = vld [vmem:[%s924 + $0x28] sm:$0xff]
      %v931 = vld [vmem:[%s924 + $0x30] sm:$0xff]
      %v932 = vld [vmem:[%s924 + $0x38] sm:$0xff]
      %v933 = vld [vmem:[%s924 + $0x40] sm:$0xff]
      %v934 = vld [vmem:[%s924 + $0x48] sm:$0xff]
      %s935 = scalar_lea.vmem %s2, 24
      %v936 = vld [vmem:[%s935] sm:$0xf]
      %v938 = vsel %vm350, %v925, 0
      %v941 = vsel %vm350, %v926, 0
      %v944 = vsel %vm350, %v927, 0
      %v947 = vsel %vm350, %v928, 0
      %v950 = vsel %vm350, %v929, 0
      %v953 = vsel %vm350, %v930, 0
      %v956 = vsel %vm350, %v931, 0
      %v959 = vsel %vm350, %v932, 0
      %v962 = vsel %vm350, %v933, 0
      %v965 = vsel %vm350, %v934, 0
      %v968 = vsel %vm381, %v936, 0
      %970 = vmatpush.msra.mxu0 0.0
      %971 = vmatpush.msra.mxu0 0.0
      %972 = vmatpush.msra.mxu0 0.0
      %973 = vmatpush.msra.mxu0 0.0
      %974 = vmatpush.msra.mxu0 0.0
      %975 = vmatpush.msra.mxu0 0.0
      %976 = vmatpush.msra.mxu0 0.0
      %977 = vmatpush.msra.mxu0 0.0
      %978 = vmatpush.msra.mxu0 0.0
      %979 = vmatpush.msra.mxu0 0.0
      %980 = vmatpush.msra.mxu0 0.0
      %981 = vmatpush.msra.mxu0 0.0
      %982 = vmatpush.msra.mxu0 0.0
      %983 = vmatpush.msra.mxu0 0.0
      %984 = vmatpush.msra.mxu0 0.0
      %985 = vmatpush.msra.mxu0 %v968
      %986 = vmatmul.f32.gmra.mxu0 %v938
      %v987 = vpop.f32.mrf.mxu0
      %v988 = vadd.f32 0.0, %v987
      %989 = vmatmul.f32.gmra.mxu0 %v941
      %v990 = vpop.f32.mrf.mxu0
      %v991 = vadd.f32 0.0, %v990
      %992 = vmatmul.f32.gmra.mxu0 %v944
      %v993 = vpop.f32.mrf.mxu0
      %v994 = vadd.f32 0.0, %v993
      %995 = vmatmul.f32.gmra.mxu0 %v947
      %v996 = vpop.f32.mrf.mxu0
      %v997 = vadd.f32 0.0, %v996
      %998 = vmatmul.f32.gmra.mxu0 %v950
      %v999 = vpop.f32.mrf.mxu0
      %v1000 = vadd.f32 0.0, %v999
      %1001 = vmatmul.f32.gmra.mxu0 %v953
      %v1002 = vpop.f32.mrf.mxu0
      %v1003 = vadd.f32 0.0, %v1002
      %1004 = vmatmul.f32.gmra.mxu0 %v956
      %v1005 = vpop.f32.mrf.mxu0
      %v1006 = vadd.f32 0.0, %v1005
      %1007 = vmatmul.f32.gmra.mxu0 %v959
      %v1008 = vpop.f32.mrf.mxu0
      %v1009 = vadd.f32 0.0, %v1008
      %1010 = vmatmul.f32.gmra.mxu0 %v962
      %v1011 = vpop.f32.mrf.mxu0
      %v1012 = vadd.f32 0.0, %v1011
      %1013 = vmatmul.f32.gmra.mxu0 %v965
      %v1014 = vpop.f32.mrf.mxu0
      %v1015 = vadd.f32 0.0, %v1014
      %1016 = vdwg.mxu0
      %v1017 = vadd.f32 %v914, %v988
      %v1018 = vadd.f32 %v915, %v991
      %v1019 = vadd.f32 %v916, %v994
      %v1020 = vadd.f32 %v917, %v997
      %v1021 = vadd.f32 %v918, %v1000
      %v1022 = vadd.f32 %v919, %v1003
      %v1023 = vadd.f32 %v920, %v1006
      %v1024 = vadd.f32 %v921, %v1009
      %v1025 = vadd.f32 %v922, %v1012
      %v1026 = vadd.f32 %v923, %v1015
      %s1027 = scalar_lea.vmem %s315, 560
      %v1028 = vld [vmem:[%s1027] sm:$0xff]
      %v1029 = vld [vmem:[%s1027 + $0x8] sm:$0xff]
      %v1030 = vld [vmem:[%s1027 + $0x10] sm:$0xff]
      %v1031 = vld [vmem:[%s1027 + $0x18] sm:$0xff]
      %v1032 = vld [vmem:[%s1027 + $0x20] sm:$0xff]
      %v1033 = vld [vmem:[%s1027 + $0x28] sm:$0xff]
      %v1034 = vld [vmem:[%s1027 + $0x30] sm:$0xff]
      %v1035 = vld [vmem:[%s1027 + $0x38] sm:$0xff]
      %v1036 = vld [vmem:[%s1027 + $0x40] sm:$0xff]
      %v1037 = vld [vmem:[%s1027 + $0x48] sm:$0xff]
      %s1038 = scalar_lea.vmem %s2, 28
      %v1039 = vld [vmem:[%s1038] sm:$0xf]
      %v1041 = vsel %vm350, %v1028, 0
      %v1044 = vsel %vm350, %v1029, 0
      %v1047 = vsel %vm350, %v1030, 0
      %v1050 = vsel %vm350, %v1031, 0
      %v1053 = vsel %vm350, %v1032, 0
      %v1056 = vsel %vm350, %v1033, 0
      %v1059 = vsel %vm350, %v1034, 0
      %v1062 = vsel %vm350, %v1035, 0
      %v1065 = vsel %vm350, %v1036, 0
      %v1068 = vsel %vm350, %v1037, 0
      %v1071 = vsel %vm381, %v1039, 0
      %1073 = vmatpush.msra.mxu0 0.0
      %1074 = vmatpush.msra.mxu0 0.0
      %1075 = vmatpush.msra.mxu0 0.0
      %1076 = vmatpush.msra.mxu0 0.0
      %1077 = vmatpush.msra.mxu0 0.0
      %1078 = vmatpush.msra.mxu0 0.0
      %1079 = vmatpush.msra.mxu0 0.0
      %1080 = vmatpush.msra.mxu0 0.0
      %1081 = vmatpush.msra.mxu0 0.0
      %1082 = vmatpush.msra.mxu0 0.0
      %1083 = vmatpush.msra.mxu0 0.0
      %1084 = vmatpush.msra.mxu0 0.0
      %1085 = vmatpush.msra.mxu0 0.0
      %1086 = vmatpush.msra.mxu0 0.0
      %1087 = vmatpush.msra.mxu0 0.0
      %1088 = vmatpush.msra.mxu0 %v1071
      %1089 = vmatmul.f32.gmra.mxu0 %v1041
      %v1090 = vpop.f32.mrf.mxu0
      %v1091 = vadd.f32 0.0, %v1090
      %1092 = vmatmul.f32.gmra.mxu0 %v1044
      %v1093 = vpop.f32.mrf.mxu0
      %v1094 = vadd.f32 0.0, %v1093
      %1095 = vmatmul.f32.gmra.mxu0 %v1047
      %v1096 = vpop.f32.mrf.mxu0
      %v1097 = vadd.f32 0.0, %v1096
      %1098 = vmatmul.f32.gmra.mxu0 %v1050
      %v1099 = vpop.f32.mrf.mxu0
      %v1100 = vadd.f32 0.0, %v1099
      %1101 = vmatmul.f32.gmra.mxu0 %v1053
      %v1102 = vpop.f32.mrf.mxu0
      %v1103 = vadd.f32 0.0, %v1102
      %1104 = vmatmul.f32.gmra.mxu0 %v1056
      %v1105 = vpop.f32.mrf.mxu0
      %v1106 = vadd.f32 0.0, %v1105
      %1107 = vmatmul.f32.gmra.mxu0 %v1059
      %v1108 = vpop.f32.mrf.mxu0
      %v1109 = vadd.f32 0.0, %v1108
      %1110 = vmatmul.f32.gmra.mxu0 %v1062
      %v1111 = vpop.f32.mrf.mxu0
      %v1112 = vadd.f32 0.0, %v1111
      %1113 = vmatmul.f32.gmra.mxu0 %v1065
      %v1114 = vpop.f32.mrf.mxu0
      %v1115 = vadd.f32 0.0, %v1114
      %1116 = vmatmul.f32.gmra.mxu0 %v1068
      %v1117 = vpop.f32.mrf.mxu0
      %v1118 = vadd.f32 0.0, %v1117
      %1119 = vdwg.mxu0
      %v1120 = vadd.f32 %v1017, %v1091
      %v1121 = vadd.f32 %v1018, %v1094
      %v1122 = vadd.f32 %v1019, %v1097
      %v1123 = vadd.f32 %v1020, %v1100
      %v1124 = vadd.f32 %v1021, %v1103
      %v1125 = vadd.f32 %v1022, %v1106
      %v1126 = vadd.f32 %v1023, %v1109
      %v1127 = vadd.f32 %v1024, %v1112
      %v1128 = vadd.f32 %v1025, %v1115
      %v1129 = vadd.f32 %v1026, %v1118
      %s1130 = scalar_lea.vmem %s315, 640
      %v1131 = vld [vmem:[%s1130] sm:$0xff]
      %v1132 = vld [vmem:[%s1130 + $0x8] sm:$0xff]
      %v1133 = vld [vmem:[%s1130 + $0x10] sm:$0xff]
      %v1134 = vld [vmem:[%s1130 + $0x18] sm:$0xff]
      %v1135 = vld [vmem:[%s1130 + $0x20] sm:$0xff]
      %v1136 = vld [vmem:[%s1130 + $0x28] sm:$0xff]
      %v1137 = vld [vmem:[%s1130 + $0x30] sm:$0xff]
      %v1138 = vld [vmem:[%s1130 + $0x38] sm:$0xff]
      %v1139 = vld [vmem:[%s1130 + $0x40] sm:$0xff]
      %v1140 = vld [vmem:[%s1130 + $0x48] sm:$0xff]
      %s1141 = scalar_lea.vmem %s2, 32
      %v1142 = vld [vmem:[%s1141] sm:$0xf]
      %v1144 = vsel %vm350, %v1131, 0
      %v1147 = vsel %vm350, %v1132, 0
      %v1150 = vsel %vm350, %v1133, 0
      %v1153 = vsel %vm350, %v1134, 0
      %v1156 = vsel %vm350, %v1135, 0
      %v1159 = vsel %vm350, %v1136, 0
      %v1162 = vsel %vm350, %v1137, 0
      %v1165 = vsel %vm350, %v1138, 0
      %v1168 = vsel %vm350, %v1139, 0
      %v1171 = vsel %vm350, %v1140, 0
      %v1174 = vsel %vm381, %v1142, 0
      %1176 = vmatpush.msra.mxu0 0.0
      %1177 = vmatpush.msra.mxu0 0.0
      %1178 = vmatpush.msra.mxu0 0.0
      %1179 = vmatpush.msra.mxu0 0.0
      %1180 = vmatpush.msra.mxu0 0.0
      %1181 = vmatpush.msra.mxu0 0.0
      %1182 = vmatpush.msra.mxu0 0.0
      %1183 = vmatpush.msra.mxu0 0.0
      %1184 = vmatpush.msra.mxu0 0.0
      %1185 = vmatpush.msra.mxu0 0.0
      %1186 = vmatpush.msra.mxu0 0.0
      %1187 = vmatpush.msra.mxu0 0.0
      %1188 = vmatpush.msra.mxu0 0.0
      %1189 = vmatpush.msra.mxu0 0.0
      %1190 = vmatpush.msra.mxu0 0.0
      %1191 = vmatpush.msra.mxu0 %v1174
      %1192 = vmatmul.f32.gmra.mxu0 %v1144
      %v1193 = vpop.f32.mrf.mxu0
      %v1194 = vadd.f32 0.0, %v1193
      %1195 = vmatmul.f32.gmra.mxu0 %v1147
      %v1196 = vpop.f32.mrf.mxu0
      %v1197 = vadd.f32 0.0, %v1196
      %1198 = vmatmul.f32.gmra.mxu0 %v1150
      %v1199 = vpop.f32.mrf.mxu0
      %v1200 = vadd.f32 0.0, %v1199
      %1201 = vmatmul.f32.gmra.mxu0 %v1153
      %v1202 = vpop.f32.mrf.mxu0
      %v1203 = vadd.f32 0.0, %v1202
      %1204 = vmatmul.f32.gmra.mxu0 %v1156
      %v1205 = vpop.f32.mrf.mxu0
      %v1206 = vadd.f32 0.0, %v1205
      %1207 = vmatmul.f32.gmra.mxu0 %v1159
      %v1208 = vpop.f32.mrf.mxu0
      %v1209 = vadd.f32 0.0, %v1208
      %1210 = vmatmul.f32.gmra.mxu0 %v1162
      %v1211 = vpop.f32.mrf.mxu0
      %v1212 = vadd.f32 0.0, %v1211
      %1213 = vmatmul.f32.gmra.mxu0 %v1165
      %v1214 = vpop.f32.mrf.mxu0
      %v1215 = vadd.f32 0.0, %v1214
      %1216 = vmatmul.f32.gmra.mxu0 %v1168
      %v1217 = vpop.f32.mrf.mxu0
      %v1218 = vadd.f32 0.0, %v1217
      %1219 = vmatmul.f32.gmra.mxu0 %v1171
      %v1220 = vpop.f32.mrf.mxu0
      %v1221 = vadd.f32 0.0, %v1220
      %1222 = vdwg.mxu0
      %v1223 = vadd.f32 %v1120, %v1194
      %v1224 = vadd.f32 %v1121, %v1197
      %v1225 = vadd.f32 %v1122, %v1200
      %v1226 = vadd.f32 %v1123, %v1203
      %v1227 = vadd.f32 %v1124, %v1206
      %v1228 = vadd.f32 %v1125, %v1209
      %v1229 = vadd.f32 %v1126, %v1212
      %v1230 = vadd.f32 %v1127, %v1215
      %v1231 = vadd.f32 %v1128, %v1218
      %v1232 = vadd.f32 %v1129, %v1221
      %v1233 = vld [vmem:[%s3] sm:$0x1]
      %v1235 = vperm.slane %v1233, 0
      %v1237 = vadd.f32 %v1223, %v1235
      %v1238 = vadd.f32 %v1224, %v1235
      %v1239 = vadd.f32 %v1225, %v1235
      %v1240 = vadd.f32 %v1226, %v1235
      %v1241 = vadd.f32 %v1227, %v1235
      %v1242 = vadd.f32 %v1228, %v1235
      %v1243 = vadd.f32 %v1229, %v1235
      %v1244 = vadd.f32 %v1230, %v1235
      %v1245 = vadd.f32 %v1231, %v1235
      %v1246 = vadd.f32 %v1232, %v1235
      %v1247 = vmax.f32 %v1237, 0.0
      %v1248 = vmax.f32 %v1238, 0.0
      %v1249 = vmax.f32 %v1239, 0.0
      %v1250 = vmax.f32 %v1240, 0.0
      %v1251 = vmax.f32 %v1241, 0.0
      %v1252 = vmax.f32 %v1242, 0.0
      %v1253 = vmax.f32 %v1243, 0.0
      %v1254 = vmax.f32 %v1244, 0.0
      %v1255 = vmax.f32 %v1245, 0.0
      %v1256 = vmax.f32 %v1246, 0.0
      %v1257 = vld [vmem:[%s7] sm:$0xff]
      %v1258 = vld [vmem:[%s7 + $0x8] sm:$0xff]
      %v1259 = vld [vmem:[%s7 + $0x10] sm:$0xff]
      %v1260 = vld [vmem:[%s7 + $0x18] sm:$0xff]
      %v1261 = vld [vmem:[%s7 + $0x20] sm:$0xff]
      %v1262 = vld [vmem:[%s7 + $0x28] sm:$0xff]
      %v1263 = vld [vmem:[%s7 + $0x30] sm:$0xff]
      %v1264 = vld [vmem:[%s7 + $0x38] sm:$0xff]
      %v1265 = vld [vmem:[%s7 + $0x40] sm:$0xff]
      %v1266 = vld [vmem:[%s7 + $0x48] sm:$0xff]
      %1268 = vset.pattern.permute.xlu0 0
      %1269 = vperm.xlu0 %1268, %v1257
      %v1270 = vpop.permute.xlu0 %1269
      %1273 = vset.pattern.permute.xlu0 0
      %1274 = vperm.xlu0 %1273, %v1258
      %v1275 = vpop.permute.xlu0 %1274
      %1278 = vset.pattern.permute.xlu0 0
      %1279 = vperm.xlu0 %1278, %v1259
      %v1280 = vpop.permute.xlu0 %1279
      %1283 = vset.pattern.permute.xlu0 0
      %1284 = vperm.xlu0 %1283, %v1260
      %v1285 = vpop.permute.xlu0 %1284
      %1288 = vset.pattern.permute.xlu0 0
      %1289 = vperm.xlu0 %1288, %v1261
      %v1290 = vpop.permute.xlu0 %1289
      %1293 = vset.pattern.permute.xlu0 0
      %1294 = vperm.xlu0 %1293, %v1262
      %v1295 = vpop.permute.xlu0 %1294
      %1298 = vset.pattern.permute.xlu0 0
      %1299 = vperm.xlu0 %1298, %v1263
      %v1300 = vpop.permute.xlu0 %1299
      %1303 = vset.pattern.permute.xlu0 0
      %1304 = vperm.xlu0 %1303, %v1264
      %v1305 = vpop.permute.xlu0 %1304
      %1308 = vset.pattern.permute.xlu0 0
      %1309 = vperm.xlu0 %1308, %v1265
      %v1310 = vpop.permute.xlu0 %1309
      %1313 = vset.pattern.permute.xlu0 0
      %1314 = vperm.xlu0 %1313, %v1266
      %v1315 = vpop.permute.xlu0 %1314
      %v1317 = vmul.f32 %v1247, %v1270
      %v1318 = vmul.f32 %v1248, %v1275
      %v1319 = vmul.f32 %v1249, %v1280
      %v1320 = vmul.f32 %v1250, %v1285
      %v1321 = vmul.f32 %v1251, %v1290
      %v1322 = vmul.f32 %v1252, %v1295
      %v1323 = vmul.f32 %v1253, %v1300
      %v1324 = vmul.f32 %v1254, %v1305
      %v1325 = vmul.f32 %v1255, %v1310
      %v1326 = vmul.f32 %v1256, %v1315
      %vm1327 = vcmask 64512
      %1328 = vst.msk [vmem:[#allocation2] sm:$0xff] %vm1327, 0.0
      %1329 = vst.msk [vmem:[#allocation2 + $0x8] sm:$0xff] %vm1327, 0.0
      %1330 = vst.msk [vmem:[#allocation2 + $0x10] sm:$0xff] %vm1327, 0.0
      %1331 = vst.msk [vmem:[#allocation2 + $0x18] sm:$0xff] %vm1327, 0.0
      %1332 = vst.msk [vmem:[#allocation2 + $0x20] sm:$0xff] %vm1327, 0.0
      %1333 = vst.msk [vmem:[#allocation2 + $0x28] sm:$0xff] %vm1327, 0.0
      %1334 = vst.msk [vmem:[#allocation2 + $0x30] sm:$0xff] %vm1327, 0.0
      %1335 = vst.msk [vmem:[#allocation2 + $0x38] sm:$0xff] %vm1327, 0.0
      %1336 = vst.msk [vmem:[#allocation2 + $0x40] sm:$0xff] %vm1327, 0.0
      %1337 = vst.msk [vmem:[#allocation2 + $0x48] sm:$0xff] %vm1327, 0.0
      %1338 = vst.msk [vmem:[#allocation2 + $0x50] sm:$0xff] %vm1327, 0.0
      %1339 = vst.msk [vmem:[#allocation2 + $0x58] sm:$0xff] %vm1327, 0.0
      %1340 = vst.msk [vmem:[#allocation2 + $0x60] sm:$0xff] %vm1327, 0.0
      %1341 = vst.msk [vmem:[#allocation2 + $0x68] sm:$0xff] %vm1327, 0.0
      %1342 = vst.msk [vmem:[#allocation2 + $0x10] sm:$0xff] %vm1327, %v1317
      %1343 = vst.msk [vmem:[#allocation2 + $0x18] sm:$0xff] %vm1327, %v1318
      %1344 = vst.msk [vmem:[#allocation2 + $0x20] sm:$0xff] %vm1327, %v1319
      %1345 = vst.msk [vmem:[#allocation2 + $0x28] sm:$0xff] %vm1327, %v1320
      %1346 = vst.msk [vmem:[#allocation2 + $0x30] sm:$0xff] %vm1327, %v1321
      %1347 = vst.msk [vmem:[#allocation2 + $0x38] sm:$0xff] %vm1327, %v1322
      %1348 = vst.msk [vmem:[#allocation2 + $0x40] sm:$0xff] %vm1327, %v1323
      %1349 = vst.msk [vmem:[#allocation2 + $0x48] sm:$0xff] %vm1327, %v1324
      %1350 = vst.msk [vmem:[#allocation2 + $0x50] sm:$0xff] %vm1327, %v1325
      %1351 = vst.msk [vmem:[#allocation2 + $0x58] sm:$0xff] %vm1327, %v1326
      %v1352 = vld [vmem:[#allocation2 + $0x5] sm:$0xff]
      %v1353 = vld [vmem:[#allocation2 + $0xd] sm:$0xff]
      %v1354 = vld [vmem:[#allocation2 + $0x15] sm:$0xff]
      %v1355 = vld [vmem:[#allocation2 + $0x1d] sm:$0xff]
      %v1356 = vld [vmem:[#allocation2 + $0x25] sm:$0xff]
      %v1357 = vld [vmem:[#allocation2 + $0x2d] sm:$0xff]
      %v1358 = vld [vmem:[#allocation2 + $0x35] sm:$0xff]
      %v1359 = vld [vmem:[#allocation2 + $0x3d] sm:$0xff]
      %v1360 = vld [vmem:[#allocation2 + $0x45] sm:$0xff]
      %v1361 = vld [vmem:[#allocation2 + $0x4d] sm:$0xff]
      %v1362 = vld [vmem:[%s4] sm:$0xff]
      %v1363 = vld [vmem:[#allocation2 + $0x6] sm:$0xff]
      %v1364 = vld [vmem:[#allocation2 + $0xe] sm:$0xff]
      %v1365 = vld [vmem:[#allocation2 + $0x16] sm:$0xff]
      %v1366 = vld [vmem:[#allocation2 + $0x1e] sm:$0xff]
      %v1367 = vld [vmem:[#allocation2 + $0x26] sm:$0xff]
      %v1368 = vld [vmem:[#allocation2 + $0x2e] sm:$0xff]
      %v1369 = vld [vmem:[#allocation2 + $0x36] sm:$0xff]
      %v1370 = vld [vmem:[#allocation2 + $0x3e] sm:$0xff]
      %v1371 = vld [vmem:[#allocation2 + $0x46] sm:$0xff]
      %v1372 = vld [vmem:[#allocation2 + $0x4e] sm:$0xff]
      %s1373 = scalar_lea.vmem %s4, 8
      %v1374 = vld [vmem:[%s1373] sm:$0xff]
      %v1376 = vsel %vm1327, %v1363, 0
      %v1379 = vsel %vm1327, %v1364, 0
      %v1382 = vsel %vm1327, %v1365, 0
      %v1385 = vsel %vm1327, %v1366, 0
      %v1388 = vsel %vm1327, %v1367, 0
      %v1391 = vsel %vm1327, %v1368, 0
      %v1394 = vsel %vm1327, %v1369, 0
      %v1397 = vsel %vm1327, %v1370, 0
      %v1400 = vsel %vm1327, %v1371, 0
      %v1403 = vsel %vm1327, %v1372, 0
      %1405 = vmatpush.msra.mxu0 0.0
      %1406 = vmatpush.msra.mxu0 0.0
      %1407 = vmatpush.msra.mxu0 0.0
      %1408 = vmatpush.msra.mxu0 0.0
      %1409 = vmatpush.msra.mxu0 0.0
      %1410 = vmatpush.msra.mxu0 0.0
      %1411 = vmatpush.msra.mxu0 0.0
      %1412 = vmatpush.msra.mxu0 0.0
      %1413 = vmatpush.msra.mxu0 0.0
      %1414 = vmatpush.msra.mxu0 0.0
      %1415 = vmatpush.msra.mxu0 0.0
      %1416 = vmatpush.msra.mxu0 0.0
      %1417 = vmatpush.msra.mxu0 0.0
      %1418 = vmatpush.msra.mxu0 0.0
      %1419 = vmatpush.msra.mxu0 0.0
      %1420 = vmatpush.msra.mxu0 %v1374
      %1421 = vmatmul.f32.gmra.mxu0 %v1376
      %v1422 = vpop.f32.mrf.mxu0
      %v1423 = vadd.f32 0.0, %v1422
      %1424 = vmatmul.f32.gmra.mxu0 %v1379
      %v1425 = vpop.f32.mrf.mxu0
      %v1426 = vadd.f32 0.0, %v1425
      %1427 = vmatmul.f32.gmra.mxu0 %v1382
      %v1428 = vpop.f32.mrf.mxu0
      %v1429 = vadd.f32 0.0, %v1428
      %1430 = vmatmul.f32.gmra.mxu0 %v1385
      %v1431 = vpop.f32.mrf.mxu0
      %v1432 = vadd.f32 0.0, %v1431
      %1433 = vmatmul.f32.gmra.mxu0 %v1388
      %v1434 = vpop.f32.mrf.mxu0
      %v1435 = vadd.f32 0.0, %v1434
      %1436 = vmatmul.f32.gmra.mxu0 %v1391
      %v1437 = vpop.f32.mrf.mxu0
      %v1438 = vadd.f32 0.0, %v1437
      %1439 = vmatmul.f32.gmra.mxu0 %v1394
      %v1440 = vpop.f32.mrf.mxu0
      %v1441 = vadd.f32 0.0, %v1440
      %1442 = vmatmul.f32.gmra.mxu0 %v1397
      %v1443 = vpop.f32.mrf.mxu0
      %v1444 = vadd.f32 0.0, %v1443
      %1445 = vmatmul.f32.gmra.mxu0 %v1400
      %v1446 = vpop.f32.mrf.mxu0
      %v1447 = vadd.f32 0.0, %v1446
      %1448 = vmatmul.f32.gmra.mxu0 %v1403
      %v1449 = vpop.f32.mrf.mxu0
      %v1450 = vadd.f32 0.0, %v1449
      %1451 = vdwg.mxu0
      %v1453 = vsel %vm1327, %v1352, 0
      %v1456 = vsel %vm1327, %v1353, 0
      %v1459 = vsel %vm1327, %v1354, 0
      %v1462 = vsel %vm1327, %v1355, 0
      %v1465 = vsel %vm1327, %v1356, 0
      %v1468 = vsel %vm1327, %v1357, 0
      %v1471 = vsel %vm1327, %v1358, 0
      %v1474 = vsel %vm1327, %v1359, 0
      %v1477 = vsel %vm1327, %v1360, 0
      %v1480 = vsel %vm1327, %v1361, 0
      %1482 = vmatpush.msra.mxu0 0.0
      %1483 = vmatpush.msra.mxu0 0.0
      %1484 = vmatpush.msra.mxu0 0.0
      %1485 = vmatpush.msra.mxu0 0.0
      %1486 = vmatpush.msra.mxu0 0.0
      %1487 = vmatpush.msra.mxu0 0.0
      %1488 = vmatpush.msra.mxu0 0.0
      %1489 = vmatpush.msra.mxu0 0.0
      %1490 = vmatpush.msra.mxu0 0.0
      %1491 = vmatpush.msra.mxu0 0.0
      %1492 = vmatpush.msra.mxu0 0.0
      %1493 = vmatpush.msra.mxu0 0.0
      %1494 = vmatpush.msra.mxu0 0.0
      %1495 = vmatpush.msra.mxu0 0.0
      %1496 = vmatpush.msra.mxu0 0.0
      %1497 = vmatpush.msra.mxu0 %v1362
      %1498 = vmatmul.f32.gmra.mxu0 %v1453
      %v1499 = vpop.f32.mrf.mxu0
      %v1500 = vadd.f32 %v1423, %v1499
      %1501 = vmatmul.f32.gmra.mxu0 %v1456
      %v1502 = vpop.f32.mrf.mxu0
      %v1503 = vadd.f32 %v1426, %v1502
      %1504 = vmatmul.f32.gmra.mxu0 %v1459
      %v1505 = vpop.f32.mrf.mxu0
      %v1506 = vadd.f32 %v1429, %v1505
      %1507 = vmatmul.f32.gmra.mxu0 %v1462
      %v1508 = vpop.f32.mrf.mxu0
      %v1509 = vadd.f32 %v1432, %v1508
      %1510 = vmatmul.f32.gmra.mxu0 %v1465
      %v1511 = vpop.f32.mrf.mxu0
      %v1512 = vadd.f32 %v1435, %v1511
      %1513 = vmatmul.f32.gmra.mxu0 %v1468
      %v1514 = vpop.f32.mrf.mxu0
      %v1515 = vadd.f32 %v1438, %v1514
      %1516 = vmatmul.f32.gmra.mxu0 %v1471
      %v1517 = vpop.f32.mrf.mxu0
      %v1518 = vadd.f32 %v1441, %v1517
      %1519 = vmatmul.f32.gmra.mxu0 %v1474
      %v1520 = vpop.f32.mrf.mxu0
      %v1521 = vadd.f32 %v1444, %v1520
      %1522 = vmatmul.f32.gmra.mxu0 %v1477
      %v1523 = vpop.f32.mrf.mxu0
      %v1524 = vadd.f32 %v1447, %v1523
      %1525 = vmatmul.f32.gmra.mxu0 %v1480
      %v1526 = vpop.f32.mrf.mxu0
      %v1527 = vadd.f32 %v1450, %v1526
      %1528 = vdwg.mxu0
      %v1529 = vld [vmem:[#allocation2 + $0x7] sm:$0xff]
      %v1530 = vld [vmem:[#allocation2 + $0xf] sm:$0xff]
      %v1531 = vld [vmem:[#allocation2 + $0x17] sm:$0xff]
      %v1532 = vld [vmem:[#allocation2 + $0x1f] sm:$0xff]
      %v1533 = vld [vmem:[#allocation2 + $0x27] sm:$0xff]
      %v1534 = vld [vmem:[#allocation2 + $0x2f] sm:$0xff]
      %v1535 = vld [vmem:[#allocation2 + $0x37] sm:$0xff]
      %v1536 = vld [vmem:[#allocation2 + $0x3f] sm:$0xff]
      %v1537 = vld [vmem:[#allocation2 + $0x47] sm:$0xff]
      %v1538 = vld [vmem:[#allocation2 + $0x4f] sm:$0xff]
      %s1539 = scalar_lea.vmem %s4, 16
      %v1540 = vld [vmem:[%s1539] sm:$0xff]
      %v1542 = vsel %vm1327, %v1529, 0
      %v1545 = vsel %vm1327, %v1530, 0
      %v1548 = vsel %vm1327, %v1531, 0
      %v1551 = vsel %vm1327, %v1532, 0
      %v1554 = vsel %vm1327, %v1533, 0
      %v1557 = vsel %vm1327, %v1534, 0
      %v1560 = vsel %vm1327, %v1535, 0
      %v1563 = vsel %vm1327, %v1536, 0
      %v1566 = vsel %vm1327, %v1537, 0
      %v1569 = vsel %vm1327, %v1538, 0
      %1571 = vmatpush.msra.mxu0 0.0
      %1572 = vmatpush.msra.mxu0 0.0
      %1573 = vmatpush.msra.mxu0 0.0
      %1574 = vmatpush.msra.mxu0 0.0
      %1575 = vmatpush.msra.mxu0 0.0
      %1576 = vmatpush.msra.mxu0 0.0
      %1577 = vmatpush.msra.mxu0 0.0
      %1578 = vmatpush.msra.mxu0 0.0
      %1579 = vmatpush.msra.mxu0 0.0
      %1580 = vmatpush.msra.mxu0 0.0
      %1581 = vmatpush.msra.mxu0 0.0
      %1582 = vmatpush.msra.mxu0 0.0
      %1583 = vmatpush.msra.mxu0 0.0
      %1584 = vmatpush.msra.mxu0 0.0
      %1585 = vmatpush.msra.mxu0 0.0
      %1586 = vmatpush.msra.mxu0 %v1540
      %1587 = vmatmul.f32.gmra.mxu0 %v1542
      %v1588 = vpop.f32.mrf.mxu0
      %v1589 = vadd.f32 0.0, %v1588
      %1590 = vmatmul.f32.gmra.mxu0 %v1545
      %v1591 = vpop.f32.mrf.mxu0
      %v1592 = vadd.f32 0.0, %v1591
      %1593 = vmatmul.f32.gmra.mxu0 %v1548
      %v1594 = vpop.f32.mrf.mxu0
      %v1595 = vadd.f32 0.0, %v1594
      %1596 = vmatmul.f32.gmra.mxu0 %v1551
      %v1597 = vpop.f32.mrf.mxu0
      %v1598 = vadd.f32 0.0, %v1597
      %1599 = vmatmul.f32.gmra.mxu0 %v1554
      %v1600 = vpop.f32.mrf.mxu0
      %v1601 = vadd.f32 0.0, %v1600
      %1602 = vmatmul.f32.gmra.mxu0 %v1557
      %v1603 = vpop.f32.mrf.mxu0
      %v1604 = vadd.f32 0.0, %v1603
      %1605 = vmatmul.f32.gmra.mxu0 %v1560
      %v1606 = vpop.f32.mrf.mxu0
      %v1607 = vadd.f32 0.0, %v1606
      %1608 = vmatmul.f32.gmra.mxu0 %v1563
      %v1609 = vpop.f32.mrf.mxu0
      %v1610 = vadd.f32 0.0, %v1609
      %1611 = vmatmul.f32.gmra.mxu0 %v1566
      %v1612 = vpop.f32.mrf.mxu0
      %v1613 = vadd.f32 0.0, %v1612
      %1614 = vmatmul.f32.gmra.mxu0 %v1569
      %v1615 = vpop.f32.mrf.mxu0
      %v1616 = vadd.f32 0.0, %v1615
      %1617 = vdwg.mxu0
      %v1618 = vadd.f32 %v1500, %v1589
      %v1619 = vadd.f32 %v1503, %v1592
      %v1620 = vadd.f32 %v1506, %v1595
      %v1621 = vadd.f32 %v1509, %v1598
      %v1622 = vadd.f32 %v1512, %v1601
      %v1623 = vadd.f32 %v1515, %v1604
      %v1624 = vadd.f32 %v1518, %v1607
      %v1625 = vadd.f32 %v1521, %v1610
      %v1626 = vadd.f32 %v1524, %v1613
      %v1627 = vadd.f32 %v1527, %v1616
      %v1628 = vld [vmem:[#allocation2 + $0xf] sm:$0xff]
      %v1629 = vld [vmem:[#allocation2 + $0x17] sm:$0xff]
      %v1630 = vld [vmem:[#allocation2 + $0x1f] sm:$0xff]
      %v1631 = vld [vmem:[#allocation2 + $0x27] sm:$0xff]
      %v1632 = vld [vmem:[#allocation2 + $0x2f] sm:$0xff]
      %v1633 = vld [vmem:[#allocation2 + $0x37] sm:$0xff]
      %v1634 = vld [vmem:[#allocation2 + $0x3f] sm:$0xff]
      %v1635 = vld [vmem:[#allocation2 + $0x47] sm:$0xff]
      %v1636 = vld [vmem:[#allocation2 + $0x4f] sm:$0xff]
      %v1637 = vld [vmem:[#allocation2 + $0x57] sm:$0xff]
      %s1638 = scalar_lea.vmem %s4, 24
      %v1639 = vld [vmem:[%s1638] sm:$0xff]
      %v1641 = vsel %vm1327, %v1628, 0
      %v1644 = vsel %vm1327, %v1629, 0
      %v1647 = vsel %vm1327, %v1630, 0
      %v1650 = vsel %vm1327, %v1631, 0
      %v1653 = vsel %vm1327, %v1632, 0
      %v1656 = vsel %vm1327, %v1633, 0
      %v1659 = vsel %vm1327, %v1634, 0
      %v1662 = vsel %vm1327, %v1635, 0
      %v1665 = vsel %vm1327, %v1636, 0
      %v1668 = vsel %vm1327, %v1637, 0
      %1670 = vmatpush.msra.mxu0 0.0
      %1671 = vmatpush.msra.mxu0 0.0
      %1672 = vmatpush.msra.mxu0 0.0
      %1673 = vmatpush.msra.mxu0 0.0
      %1674 = vmatpush.msra.mxu0 0.0
      %1675 = vmatpush.msra.mxu0 0.0
      %1676 = vmatpush.msra.mxu0 0.0
      %1677 = vmatpush.msra.mxu0 0.0
      %1678 = vmatpush.msra.mxu0 0.0
      %1679 = vmatpush.msra.mxu0 0.0
      %1680 = vmatpush.msra.mxu0 0.0
      %1681 = vmatpush.msra.mxu0 0.0
      %1682 = vmatpush.msra.mxu0 0.0
      %1683 = vmatpush.msra.mxu0 0.0
      %1684 = vmatpush.msra.mxu0 0.0
      %1685 = vmatpush.msra.mxu0 %v1639
      %1686 = vmatmul.f32.gmra.mxu0 %v1641
      %v1687 = vpop.f32.mrf.mxu0
      %v1688 = vadd.f32 0.0, %v1687
      %1689 = vmatmul.f32.gmra.mxu0 %v1644
      %v1690 = vpop.f32.mrf.mxu0
      %v1691 = vadd.f32 0.0, %v1690
      %1692 = vmatmul.f32.gmra.mxu0 %v1647
      %v1693 = vpop.f32.mrf.mxu0
      %v1694 = vadd.f32 0.0, %v1693
      %1695 = vmatmul.f32.gmra.mxu0 %v1650
      %v1696 = vpop.f32.mrf.mxu0
      %v1697 = vadd.f32 0.0, %v1696
      %1698 = vmatmul.f32.gmra.mxu0 %v1653
      %v1699 = vpop.f32.mrf.mxu0
      %v1700 = vadd.f32 0.0, %v1699
      %1701 = vmatmul.f32.gmra.mxu0 %v1656
      %v1702 = vpop.f32.mrf.mxu0
      %v1703 = vadd.f32 0.0, %v1702
      %1704 = vmatmul.f32.gmra.mxu0 %v1659
      %v1705 = vpop.f32.mrf.mxu0
      %v1706 = vadd.f32 0.0, %v1705
      %1707 = vmatmul.f32.gmra.mxu0 %v1662
      %v1708 = vpop.f32.mrf.mxu0
      %v1709 = vadd.f32 0.0, %v1708
      %1710 = vmatmul.f32.gmra.mxu0 %v1665
      %v1711 = vpop.f32.mrf.mxu0
      %v1712 = vadd.f32 0.0, %v1711
      %1713 = vmatmul.f32.gmra.mxu0 %v1668
      %v1714 = vpop.f32.mrf.mxu0
      %v1715 = vadd.f32 0.0, %v1714
      %1716 = vdwg.mxu0
      %v1717 = vadd.f32 %v1618, %v1688
      %v1718 = vadd.f32 %v1619, %v1691
      %v1719 = vadd.f32 %v1620, %v1694
      %v1720 = vadd.f32 %v1621, %v1697
      %v1721 = vadd.f32 %v1622, %v1700
      %v1722 = vadd.f32 %v1623, %v1703
      %v1723 = vadd.f32 %v1624, %v1706
      %v1724 = vadd.f32 %v1625, %v1709
      %v1725 = vadd.f32 %v1626, %v1712
      %v1726 = vadd.f32 %v1627, %v1715
      %v1727 = vld [vmem:[#allocation2 + $0x10] sm:$0xff]
      %v1728 = vld [vmem:[#allocation2 + $0x18] sm:$0xff]
      %v1729 = vld [vmem:[#allocation2 + $0x20] sm:$0xff]
      %v1730 = vld [vmem:[#allocation2 + $0x28] sm:$0xff]
      %v1731 = vld [vmem:[#allocation2 + $0x30] sm:$0xff]
      %v1732 = vld [vmem:[#allocation2 + $0x38] sm:$0xff]
      %v1733 = vld [vmem:[#allocation2 + $0x40] sm:$0xff]
      %v1734 = vld [vmem:[#allocation2 + $0x48] sm:$0xff]
      %v1735 = vld [vmem:[#allocation2 + $0x50] sm:$0xff]
      %v1736 = vld [vmem:[#allocation2 + $0x58] sm:$0xff]
      %s1737 = scalar_lea.vmem %s4, 32
      %v1738 = vld [vmem:[%s1737] sm:$0xff]
      %v1740 = vsel %vm1327, %v1727, 0
      %v1743 = vsel %vm1327, %v1728, 0
      %v1746 = vsel %vm1327, %v1729, 0
      %v1749 = vsel %vm1327, %v1730, 0
      %v1752 = vsel %vm1327, %v1731, 0
      %v1755 = vsel %vm1327, %v1732, 0
      %v1758 = vsel %vm1327, %v1733, 0
      %v1761 = vsel %vm1327, %v1734, 0
      %v1764 = vsel %vm1327, %v1735, 0
      %v1767 = vsel %vm1327, %v1736, 0
      %1769 = vmatpush.msra.mxu0 0.0
      %1770 = vmatpush.msra.mxu0 0.0
      %1771 = vmatpush.msra.mxu0 0.0
      %1772 = vmatpush.msra.mxu0 0.0
      %1773 = vmatpush.msra.mxu0 0.0
      %1774 = vmatpush.msra.mxu0 0.0
      %1775 = vmatpush.msra.mxu0 0.0
      %1776 = vmatpush.msra.mxu0 0.0
      %1777 = vmatpush.msra.mxu0 0.0
      %1778 = vmatpush.msra.mxu0 0.0
      %1779 = vmatpush.msra.mxu0 0.0
      %1780 = vmatpush.msra.mxu0 0.0
      %1781 = vmatpush.msra.mxu0 0.0
      %1782 = vmatpush.msra.mxu0 0.0
      %1783 = vmatpush.msra.mxu0 0.0
      %1784 = vmatpush.msra.mxu0 %v1738
      %1785 = vmatmul.f32.gmra.mxu0 %v1740
      %v1786 = vpop.f32.mrf.mxu0
      %v1787 = vadd.f32 0.0, %v1786
      %1788 = vmatmul.f32.gmra.mxu0 %v1743
      %v1789 = vpop.f32.mrf.mxu0
      %v1790 = vadd.f32 0.0, %v1789
      %1791 = vmatmul.f32.gmra.mxu0 %v1746
      %v1792 = vpop.f32.mrf.mxu0
      %v1793 = vadd.f32 0.0, %v1792
      %1794 = vmatmul.f32.gmra.mxu0 %v1749
      %v1795 = vpop.f32.mrf.mxu0
      %v1796 = vadd.f32 0.0, %v1795
      %1797 = vmatmul.f32.gmra.mxu0 %v1752
      %v1798 = vpop.f32.mrf.mxu0
      %v1799 = vadd.f32 0.0, %v1798
      %1800 = vmatmul.f32.gmra.mxu0 %v1755
      %v1801 = vpop.f32.mrf.mxu0
      %v1802 = vadd.f32 0.0, %v1801
      %1803 = vmatmul.f32.gmra.mxu0 %v1758
      %v1804 = vpop.f32.mrf.mxu0
      %v1805 = vadd.f32 0.0, %v1804
      %1806 = vmatmul.f32.gmra.mxu0 %v1761
      %v1807 = vpop.f32.mrf.mxu0
      %v1808 = vadd.f32 0.0, %v1807
      %1809 = vmatmul.f32.gmra.mxu0 %v1764
      %v1810 = vpop.f32.mrf.mxu0
      %v1811 = vadd.f32 0.0, %v1810
      %1812 = vmatmul.f32.gmra.mxu0 %v1767
      %v1813 = vpop.f32.mrf.mxu0
      %v1814 = vadd.f32 0.0, %v1813
      %1815 = vdwg.mxu0
      %v1816 = vadd.f32 %v1717, %v1787
      %v1817 = vadd.f32 %v1718, %v1790
      %v1818 = vadd.f32 %v1719, %v1793
      %v1819 = vadd.f32 %v1720, %v1796
      %v1820 = vadd.f32 %v1721, %v1799
      %v1821 = vadd.f32 %v1722, %v1802
      %v1822 = vadd.f32 %v1723, %v1805
      %v1823 = vadd.f32 %v1724, %v1808
      %v1824 = vadd.f32 %v1725, %v1811
      %v1825 = vadd.f32 %v1726, %v1814
      %v1826 = vld [vmem:[#allocation2 + $0x11] sm:$0xff]
      %v1827 = vld [vmem:[#allocation2 + $0x19] sm:$0xff]
      %v1828 = vld [vmem:[#allocation2 + $0x21] sm:$0xff]
      %v1829 = vld [vmem:[#allocation2 + $0x29] sm:$0xff]
      %v1830 = vld [vmem:[#allocation2 + $0x31] sm:$0xff]
      %v1831 = vld [vmem:[#allocation2 + $0x39] sm:$0xff]
      %v1832 = vld [vmem:[#allocation2 + $0x41] sm:$0xff]
      %v1833 = vld [vmem:[#allocation2 + $0x49] sm:$0xff]
      %v1834 = vld [vmem:[#allocation2 + $0x51] sm:$0xff]
      %v1835 = vld [vmem:[#allocation2 + $0x59] sm:$0xff]
      %s1836 = scalar_lea.vmem %s4, 40
      %v1837 = vld [vmem:[%s1836] sm:$0xff]
      %v1839 = vsel %vm1327, %v1826, 0
      %v1842 = vsel %vm1327, %v1827, 0
      %v1845 = vsel %vm1327, %v1828, 0
      %v1848 = vsel %vm1327, %v1829, 0
      %v1851 = vsel %vm1327, %v1830, 0
      %v1854 = vsel %vm1327, %v1831, 0
      %v1857 = vsel %vm1327, %v1832, 0
      %v1860 = vsel %vm1327, %v1833, 0
      %v1863 = vsel %vm1327, %v1834, 0
      %v1866 = vsel %vm1327, %v1835, 0
      %1868 = vmatpush.msra.mxu0 0.0
      %1869 = vmatpush.msra.mxu0 0.0
      %1870 = vmatpush.msra.mxu0 0.0
      %1871 = vmatpush.msra.mxu0 0.0
      %1872 = vmatpush.msra.mxu0 0.0
      %1873 = vmatpush.msra.mxu0 0.0
      %1874 = vmatpush.msra.mxu0 0.0
      %1875 = vmatpush.msra.mxu0 0.0
      %1876 = vmatpush.msra.mxu0 0.0
      %1877 = vmatpush.msra.mxu0 0.0
      %1878 = vmatpush.msra.mxu0 0.0
      %1879 = vmatpush.msra.mxu0 0.0
      %1880 = vmatpush.msra.mxu0 0.0
      %1881 = vmatpush.msra.mxu0 0.0
      %1882 = vmatpush.msra.mxu0 0.0
      %1883 = vmatpush.msra.mxu0 %v1837
      %1884 = vmatmul.f32.gmra.mxu0 %v1839
      %v1885 = vpop.f32.mrf.mxu0
      %v1886 = vadd.f32 0.0, %v1885
      %1887 = vmatmul.f32.gmra.mxu0 %v1842
      %v1888 = vpop.f32.mrf.mxu0
      %v1889 = vadd.f32 0.0, %v1888
      %1890 = vmatmul.f32.gmra.mxu0 %v1845
      %v1891 = vpop.f32.mrf.mxu0
      %v1892 = vadd.f32 0.0, %v1891
      %1893 = vmatmul.f32.gmra.mxu0 %v1848
      %v1894 = vpop.f32.mrf.mxu0
      %v1895 = vadd.f32 0.0, %v1894
      %1896 = vmatmul.f32.gmra.mxu0 %v1851
      %v1897 = vpop.f32.mrf.mxu0
      %v1898 = vadd.f32 0.0, %v1897
      %1899 = vmatmul.f32.gmra.mxu0 %v1854
      %v1900 = vpop.f32.mrf.mxu0
      %v1901 = vadd.f32 0.0, %v1900
      %1902 = vmatmul.f32.gmra.mxu0 %v1857
      %v1903 = vpop.f32.mrf.mxu0
      %v1904 = vadd.f32 0.0, %v1903
      %1905 = vmatmul.f32.gmra.mxu0 %v1860
      %v1906 = vpop.f32.mrf.mxu0
      %v1907 = vadd.f32 0.0, %v1906
      %1908 = vmatmul.f32.gmra.mxu0 %v1863
      %v1909 = vpop.f32.mrf.mxu0
      %v1910 = vadd.f32 0.0, %v1909
      %1911 = vmatmul.f32.gmra.mxu0 %v1866
      %v1912 = vpop.f32.mrf.mxu0
      %v1913 = vadd.f32 0.0, %v1912
      %1914 = vdwg.mxu0
      %v1915 = vadd.f32 %v1816, %v1886
      %v1916 = vadd.f32 %v1817, %v1889
      %v1917 = vadd.f32 %v1818, %v1892
      %v1918 = vadd.f32 %v1819, %v1895
      %v1919 = vadd.f32 %v1820, %v1898
      %v1920 = vadd.f32 %v1821, %v1901
      %v1921 = vadd.f32 %v1822, %v1904
      %v1922 = vadd.f32 %v1823, %v1907
      %v1923 = vadd.f32 %v1824, %v1910
      %v1924 = vadd.f32 %v1825, %v1913
      %v1925 = vld [vmem:[#allocation2 + $0x19] sm:$0xff]
      %v1926 = vld [vmem:[#allocation2 + $0x21] sm:$0xff]
      %v1927 = vld [vmem:[#allocation2 + $0x29] sm:$0xff]
      %v1928 = vld [vmem:[#allocation2 + $0x31] sm:$0xff]
      %v1929 = vld [vmem:[#allocation2 + $0x39] sm:$0xff]
      %v1930 = vld [vmem:[#allocation2 + $0x41] sm:$0xff]
      %v1931 = vld [vmem:[#allocation2 + $0x49] sm:$0xff]
      %v1932 = vld [vmem:[#allocation2 + $0x51] sm:$0xff]
      %v1933 = vld [vmem:[#allocation2 + $0x59] sm:$0xff]
      %v1934 = vld [vmem:[#allocation2 + $0x61] sm:$0xff]
      %s1935 = scalar_lea.vmem %s4, 48
      %v1936 = vld [vmem:[%s1935] sm:$0xff]
      %v1938 = vsel %vm1327, %v1925, 0
      %v1941 = vsel %vm1327, %v1926, 0
      %v1944 = vsel %vm1327, %v1927, 0
      %v1947 = vsel %vm1327, %v1928, 0
      %v1950 = vsel %vm1327, %v1929, 0
      %v1953 = vsel %vm1327, %v1930, 0
      %v1956 = vsel %vm1327, %v1931, 0
      %v1959 = vsel %vm1327, %v1932, 0
      %v1962 = vsel %vm1327, %v1933, 0
      %v1965 = vsel %vm1327, %v1934, 0
      %1967 = vmatpush.msra.mxu0 0.0
      %1968 = vmatpush.msra.mxu0 0.0
      %1969 = vmatpush.msra.mxu0 0.0
      %1970 = vmatpush.msra.mxu0 0.0
      %1971 = vmatpush.msra.mxu0 0.0
      %1972 = vmatpush.msra.mxu0 0.0
      %1973 = vmatpush.msra.mxu0 0.0
      %1974 = vmatpush.msra.mxu0 0.0
      %1975 = vmatpush.msra.mxu0 0.0
      %1976 = vmatpush.msra.mxu0 0.0
      %1977 = vmatpush.msra.mxu0 0.0
      %1978 = vmatpush.msra.mxu0 0.0
      %1979 = vmatpush.msra.mxu0 0.0
      %1980 = vmatpush.msra.mxu0 0.0
      %1981 = vmatpush.msra.mxu0 0.0
      %1982 = vmatpush.msra.mxu0 %v1936
      %1983 = vmatmul.f32.gmra.mxu0 %v1938
      %v1984 = vpop.f32.mrf.mxu0
      %v1985 = vadd.f32 0.0, %v1984
      %1986 = vmatmul.f32.gmra.mxu0 %v1941
      %v1987 = vpop.f32.mrf.mxu0
      %v1988 = vadd.f32 0.0, %v1987
      %1989 = vmatmul.f32.gmra.mxu0 %v1944
      %v1990 = vpop.f32.mrf.mxu0
      %v1991 = vadd.f32 0.0, %v1990
      %1992 = vmatmul.f32.gmra.mxu0 %v1947
      %v1993 = vpop.f32.mrf.mxu0
      %v1994 = vadd.f32 0.0, %v1993
      %1995 = vmatmul.f32.gmra.mxu0 %v1950
      %v1996 = vpop.f32.mrf.mxu0
      %v1997 = vadd.f32 0.0, %v1996
      %1998 = vmatmul.f32.gmra.mxu0 %v1953
      %v1999 = vpop.f32.mrf.mxu0
      %v2000 = vadd.f32 0.0, %v1999
      %2001 = vmatmul.f32.gmra.mxu0 %v1956
      %v2002 = vpop.f32.mrf.mxu0
      %v2003 = vadd.f32 0.0, %v2002
      %2004 = vmatmul.f32.gmra.mxu0 %v1959
      %v2005 = vpop.f32.mrf.mxu0
      %v2006 = vadd.f32 0.0, %v2005
      %2007 = vmatmul.f32.gmra.mxu0 %v1962
      %v2008 = vpop.f32.mrf.mxu0
      %v2009 = vadd.f32 0.0, %v2008
      %2010 = vmatmul.f32.gmra.mxu0 %v1965
      %v2011 = vpop.f32.mrf.mxu0
      %v2012 = vadd.f32 0.0, %v2011
      %2013 = vdwg.mxu0
      %v2014 = vadd.f32 %v1915, %v1985
      %v2015 = vadd.f32 %v1916, %v1988
      %v2016 = vadd.f32 %v1917, %v1991
      %v2017 = vadd.f32 %v1918, %v1994
      %v2018 = vadd.f32 %v1919, %v1997
      %v2019 = vadd.f32 %v1920, %v2000
      %v2020 = vadd.f32 %v1921, %v2003
      %v2021 = vadd.f32 %v1922, %v2006
      %v2022 = vadd.f32 %v1923, %v2009
      %v2023 = vadd.f32 %v1924, %v2012
      %v2024 = vld [vmem:[#allocation2 + $0x1a] sm:$0xff]
      %v2025 = vld [vmem:[#allocation2 + $0x22] sm:$0xff]
      %v2026 = vld [vmem:[#allocation2 + $0x2a] sm:$0xff]
      %v2027 = vld [vmem:[#allocation2 + $0x32] sm:$0xff]
      %v2028 = vld [vmem:[#allocation2 + $0x3a] sm:$0xff]
      %v2029 = vld [vmem:[#allocation2 + $0x42] sm:$0xff]
      %v2030 = vld [vmem:[#allocation2 + $0x4a] sm:$0xff]
      %v2031 = vld [vmem:[#allocation2 + $0x52] sm:$0xff]
      %v2032 = vld [vmem:[#allocation2 + $0x5a] sm:$0xff]
      %v2033 = vld [vmem:[#allocation2 + $0x62] sm:$0xff]
      %s2034 = scalar_lea.vmem %s4, 56
      %v2035 = vld [vmem:[%s2034] sm:$0xff]
      %v2037 = vsel %vm1327, %v2024, 0
      %v2040 = vsel %vm1327, %v2025, 0
      %v2043 = vsel %vm1327, %v2026, 0
      %v2046 = vsel %vm1327, %v2027, 0
      %v2049 = vsel %vm1327, %v2028, 0
      %v2052 = vsel %vm1327, %v2029, 0
      %v2055 = vsel %vm1327, %v2030, 0
      %v2058 = vsel %vm1327, %v2031, 0
      %v2061 = vsel %vm1327, %v2032, 0
      %v2064 = vsel %vm1327, %v2033, 0
      %2066 = vmatpush.msra.mxu0 0.0
      %2067 = vmatpush.msra.mxu0 0.0
      %2068 = vmatpush.msra.mxu0 0.0
      %2069 = vmatpush.msra.mxu0 0.0
      %2070 = vmatpush.msra.mxu0 0.0
      %2071 = vmatpush.msra.mxu0 0.0
      %2072 = vmatpush.msra.mxu0 0.0
      %2073 = vmatpush.msra.mxu0 0.0
      %2074 = vmatpush.msra.mxu0 0.0
      %2075 = vmatpush.msra.mxu0 0.0
      %2076 = vmatpush.msra.mxu0 0.0
      %2077 = vmatpush.msra.mxu0 0.0
      %2078 = vmatpush.msra.mxu0 0.0
      %2079 = vmatpush.msra.mxu0 0.0
      %2080 = vmatpush.msra.mxu0 0.0
      %2081 = vmatpush.msra.mxu0 %v2035
      %2082 = vmatmul.f32.gmra.mxu0 %v2037
      %v2083 = vpop.f32.mrf.mxu0
      %v2084 = vadd.f32 0.0, %v2083
      %2085 = vmatmul.f32.gmra.mxu0 %v2040
      %v2086 = vpop.f32.mrf.mxu0
      %v2087 = vadd.f32 0.0, %v2086
      %2088 = vmatmul.f32.gmra.mxu0 %v2043
      %v2089 = vpop.f32.mrf.mxu0
      %v2090 = vadd.f32 0.0, %v2089
      %2091 = vmatmul.f32.gmra.mxu0 %v2046
      %v2092 = vpop.f32.mrf.mxu0
      %v2093 = vadd.f32 0.0, %v2092
      %2094 = vmatmul.f32.gmra.mxu0 %v2049
      %v2095 = vpop.f32.mrf.mxu0
      %v2096 = vadd.f32 0.0, %v2095
      %2097 = vmatmul.f32.gmra.mxu0 %v2052
      %v2098 = vpop.f32.mrf.mxu0
      %v2099 = vadd.f32 0.0, %v2098
      %2100 = vmatmul.f32.gmra.mxu0 %v2055
      %v2101 = vpop.f32.mrf.mxu0
      %v2102 = vadd.f32 0.0, %v2101
      %2103 = vmatmul.f32.gmra.mxu0 %v2058
      %v2104 = vpop.f32.mrf.mxu0
      %v2105 = vadd.f32 0.0, %v2104
      %2106 = vmatmul.f32.gmra.mxu0 %v2061
      %v2107 = vpop.f32.mrf.mxu0
      %v2108 = vadd.f32 0.0, %v2107
      %2109 = vmatmul.f32.gmra.mxu0 %v2064
      %v2110 = vpop.f32.mrf.mxu0
      %v2111 = vadd.f32 0.0, %v2110
      %2112 = vdwg.mxu0
      %v2113 = vadd.f32 %v2014, %v2084
      %v2114 = vadd.f32 %v2015, %v2087
      %v2115 = vadd.f32 %v2016, %v2090
      %v2116 = vadd.f32 %v2017, %v2093
      %v2117 = vadd.f32 %v2018, %v2096
      %v2118 = vadd.f32 %v2019, %v2099
      %v2119 = vadd.f32 %v2020, %v2102
      %v2120 = vadd.f32 %v2021, %v2105
      %v2121 = vadd.f32 %v2022, %v2108
      %v2122 = vadd.f32 %v2023, %v2111
      %v2123 = vld [vmem:[#allocation2 + $0x1b] sm:$0xff]
      %v2124 = vld [vmem:[#allocation2 + $0x23] sm:$0xff]
      %v2125 = vld [vmem:[#allocation2 + $0x2b] sm:$0xff]
      %v2126 = vld [vmem:[#allocation2 + $0x33] sm:$0xff]
      %v2127 = vld [vmem:[#allocation2 + $0x3b] sm:$0xff]
      %v2128 = vld [vmem:[#allocation2 + $0x43] sm:$0xff]
      %v2129 = vld [vmem:[#allocation2 + $0x4b] sm:$0xff]
      %v2130 = vld [vmem:[#allocation2 + $0x53] sm:$0xff]
      %v2131 = vld [vmem:[#allocation2 + $0x5b] sm:$0xff]
      %v2132 = vld [vmem:[#allocation2 + $0x63] sm:$0xff]
      %s2133 = scalar_lea.vmem %s4, 64
      %v2134 = vld [vmem:[%s2133] sm:$0xff]
      %v2136 = vsel %vm1327, %v2123, 0
      %v2139 = vsel %vm1327, %v2124, 0
      %v2142 = vsel %vm1327, %v2125, 0
      %v2145 = vsel %vm1327, %v2126, 0
      %v2148 = vsel %vm1327, %v2127, 0
      %v2151 = vsel %vm1327, %v2128, 0
      %v2154 = vsel %vm1327, %v2129, 0
      %v2157 = vsel %vm1327, %v2130, 0
      %v2160 = vsel %vm1327, %v2131, 0
      %v2163 = vsel %vm1327, %v2132, 0
      %2165 = vmatpush.msra.mxu0 0.0
      %2166 = vmatpush.msra.mxu0 0.0
      %2167 = vmatpush.msra.mxu0 0.0
      %2168 = vmatpush.msra.mxu0 0.0
      %2169 = vmatpush.msra.mxu0 0.0
      %2170 = vmatpush.msra.mxu0 0.0
      %2171 = vmatpush.msra.mxu0 0.0
      %2172 = vmatpush.msra.mxu0 0.0
      %2173 = vmatpush.msra.mxu0 0.0
      %2174 = vmatpush.msra.mxu0 0.0
      %2175 = vmatpush.msra.mxu0 0.0
      %2176 = vmatpush.msra.mxu0 0.0
      %2177 = vmatpush.msra.mxu0 0.0
      %2178 = vmatpush.msra.mxu0 0.0
      %2179 = vmatpush.msra.mxu0 0.0
      %2180 = vmatpush.msra.mxu0 %v2134
      %2181 = vmatmul.f32.gmra.mxu0 %v2136
      %v2182 = vpop.f32.mrf.mxu0
      %v2183 = vadd.f32 0.0, %v2182
      %2184 = vmatmul.f32.gmra.mxu0 %v2139
      %v2185 = vpop.f32.mrf.mxu0
      %v2186 = vadd.f32 0.0, %v2185
      %2187 = vmatmul.f32.gmra.mxu0 %v2142
      %v2188 = vpop.f32.mrf.mxu0
      %v2189 = vadd.f32 0.0, %v2188
      %2190 = vmatmul.f32.gmra.mxu0 %v2145
      %v2191 = vpop.f32.mrf.mxu0
      %v2192 = vadd.f32 0.0, %v2191
      %2193 = vmatmul.f32.gmra.mxu0 %v2148
      %v2194 = vpop.f32.mrf.mxu0
      %v2195 = vadd.f32 0.0, %v2194
      %2196 = vmatmul.f32.gmra.mxu0 %v2151
      %v2197 = vpop.f32.mrf.mxu0
      %v2198 = vadd.f32 0.0, %v2197
      %2199 = vmatmul.f32.gmra.mxu0 %v2154
      %v2200 = vpop.f32.mrf.mxu0
      %v2201 = vadd.f32 0.0, %v2200
      %2202 = vmatmul.f32.gmra.mxu0 %v2157
      %v2203 = vpop.f32.mrf.mxu0
      %v2204 = vadd.f32 0.0, %v2203
      %2205 = vmatmul.f32.gmra.mxu0 %v2160
      %v2206 = vpop.f32.mrf.mxu0
      %v2207 = vadd.f32 0.0, %v2206
      %2208 = vmatmul.f32.gmra.mxu0 %v2163
      %v2209 = vpop.f32.mrf.mxu0
      %v2210 = vadd.f32 0.0, %v2209
      %2211 = vdwg.mxu0
      %v2212 = vadd.f32 %v2113, %v2183
      %v2213 = vadd.f32 %v2114, %v2186
      %v2214 = vadd.f32 %v2115, %v2189
      %v2215 = vadd.f32 %v2116, %v2192
      %v2216 = vadd.f32 %v2117, %v2195
      %v2217 = vadd.f32 %v2118, %v2198
      %v2218 = vadd.f32 %v2119, %v2201
      %v2219 = vadd.f32 %v2120, %v2204
      %v2220 = vadd.f32 %v2121, %v2207
      %v2221 = vadd.f32 %v2122, %v2210
      %v2222 = vld [vmem:[%s320] sm:$0xff]
      %v2223 = vld [vmem:[%s320 + $0x8] sm:$0xff]
      %v2224 = vld [vmem:[%s320 + $0x10] sm:$0xff]
      %v2225 = vld [vmem:[%s320 + $0x18] sm:$0xff]
      %v2226 = vld [vmem:[%s320 + $0x20] sm:$0xff]
      %v2227 = vld [vmem:[%s320 + $0x28] sm:$0xff]
      %v2228 = vld [vmem:[%s320 + $0x30] sm:$0xff]
      %v2229 = vld [vmem:[%s320 + $0x38] sm:$0xff]
      %v2230 = vld [vmem:[%s320 + $0x40] sm:$0xff]
      %v2231 = vld [vmem:[%s320 + $0x48] sm:$0xff]
      %v2232 = vld [vmem:[%s6] sm:$0xf]
      %v2234 = vsel %vm350, %v2222, 0
      %v2237 = vsel %vm350, %v2223, 0
      %v2240 = vsel %vm350, %v2224, 0
      %v2243 = vsel %vm350, %v2225, 0
      %v2246 = vsel %vm350, %v2226, 0
      %v2249 = vsel %vm350, %v2227, 0
      %v2252 = vsel %vm350, %v2228, 0
      %v2255 = vsel %vm350, %v2229, 0
      %v2258 = vsel %vm350, %v2230, 0
      %v2261 = vsel %vm350, %v2231, 0
      %v2264 = vsel %vm381, %v2232, 0
      %2266 = vmatpush.msra.mxu0 0.0
      %2267 = vmatpush.msra.mxu0 0.0
      %2268 = vmatpush.msra.mxu0 0.0
      %2269 = vmatpush.msra.mxu0 0.0
      %2270 = vmatpush.msra.mxu0 0.0
      %2271 = vmatpush.msra.mxu0 0.0
      %2272 = vmatpush.msra.mxu0 0.0
      %2273 = vmatpush.msra.mxu0 0.0
      %2274 = vmatpush.msra.mxu0 0.0
      %2275 = vmatpush.msra.mxu0 0.0
      %2276 = vmatpush.msra.mxu0 0.0
      %2277 = vmatpush.msra.mxu0 0.0
      %2278 = vmatpush.msra.mxu0 0.0
      %2279 = vmatpush.msra.mxu0 0.0
      %2280 = vmatpush.msra.mxu0 0.0
      %2281 = vmatpush.msra.mxu0 %v2264
      %2282 = vmatmul.f32.gmra.mxu0 %v2234
      %v2283 = vpop.f32.mrf.mxu0
      %v2284 = vadd.f32 0.0, %v2283
      %2285 = vmatmul.f32.gmra.mxu0 %v2237
      %v2286 = vpop.f32.mrf.mxu0
      %v2287 = vadd.f32 0.0, %v2286
      %2288 = vmatmul.f32.gmra.mxu0 %v2240
      %v2289 = vpop.f32.mrf.mxu0
      %v2290 = vadd.f32 0.0, %v2289
      %2291 = vmatmul.f32.gmra.mxu0 %v2243
      %v2292 = vpop.f32.mrf.mxu0
      %v2293 = vadd.f32 0.0, %v2292
      %2294 = vmatmul.f32.gmra.mxu0 %v2246
      %v2295 = vpop.f32.mrf.mxu0
      %v2296 = vadd.f32 0.0, %v2295
      %2297 = vmatmul.f32.gmra.mxu0 %v2249
      %v2298 = vpop.f32.mrf.mxu0
      %v2299 = vadd.f32 0.0, %v2298
      %2300 = vmatmul.f32.gmra.mxu0 %v2252
      %v2301 = vpop.f32.mrf.mxu0
      %v2302 = vadd.f32 0.0, %v2301
      %2303 = vmatmul.f32.gmra.mxu0 %v2255
      %v2304 = vpop.f32.mrf.mxu0
      %v2305 = vadd.f32 0.0, %v2304
      %2306 = vmatmul.f32.gmra.mxu0 %v2258
      %v2307 = vpop.f32.mrf.mxu0
      %v2308 = vadd.f32 0.0, %v2307
      %2309 = vmatmul.f32.gmra.mxu0 %v2261
      %v2310 = vpop.f32.mrf.mxu0
      %v2311 = vadd.f32 0.0, %v2310
      %2312 = vdwg.mxu0
      %v2313 = vld [vmem:[%s5] sm:$0x1]
      %v2315 = vperm.slane %v2313, 0
      %v2317 = vadd.f32 %v2212, %v2315
      %v2318 = vadd.f32 %v2213, %v2315
      %v2319 = vadd.f32 %v2214, %v2315
      %v2320 = vadd.f32 %v2215, %v2315
      %v2321 = vadd.f32 %v2216, %v2315
      %v2322 = vadd.f32 %v2217, %v2315
      %v2323 = vadd.f32 %v2218, %v2315
      %v2324 = vadd.f32 %v2219, %v2315
      %v2325 = vadd.f32 %v2220, %v2315
      %v2326 = vadd.f32 %v2221, %v2315
      %v2327 = vadd.f32 %v2317, %v2284
      %v2328 = vadd.f32 %v2318, %v2287
      %v2329 = vadd.f32 %v2319, %v2290
      %v2330 = vadd.f32 %v2320, %v2293
      %v2331 = vadd.f32 %v2321, %v2296
      %v2332 = vadd.f32 %v2322, %v2299
      %v2333 = vadd.f32 %v2323, %v2302
      %v2334 = vadd.f32 %v2324, %v2305
      %v2335 = vadd.f32 %v2325, %v2308
      %v2336 = vadd.f32 %v2326, %v2311
      %v2337 = vmax.f32 %v2327, 0.0
      %v2338 = vmax.f32 %v2328, 0.0
      %v2339 = vmax.f32 %v2329, 0.0
      %v2340 = vmax.f32 %v2330, 0.0
      %v2341 = vmax.f32 %v2331, 0.0
      %v2342 = vmax.f32 %v2332, 0.0
      %v2343 = vmax.f32 %v2333, 0.0
      %v2344 = vmax.f32 %v2334, 0.0
      %v2345 = vmax.f32 %v2335, 0.0
      %v2346 = vmax.f32 %v2336, 0.0
      %2347 = vst.msk [vmem:[%s325] sm:$0xff] %vm1327, %v2337
      %2348 = vst.msk [vmem:[%s325 + $0x8] sm:$0xff] %vm1327, %v2338
      %2349 = vst.msk [vmem:[%s325 + $0x10] sm:$0xff] %vm1327, %v2339
      %2350 = vst.msk [vmem:[%s325 + $0x18] sm:$0xff] %vm1327, %v2340
      %2351 = vst.msk [vmem:[%s325 + $0x20] sm:$0xff] %vm1327, %v2341
      %2352 = vst.msk [vmem:[%s325 + $0x28] sm:$0xff] %vm1327, %v2342
      %2353 = vst.msk [vmem:[%s325 + $0x30] sm:$0xff] %vm1327, %v2343
      %2354 = vst.msk [vmem:[%s325 + $0x38] sm:$0xff] %vm1327, %v2344
      %2355 = vst.msk [vmem:[%s325 + $0x40] sm:$0xff] %vm1327, %v2345
      %2356 = vst.msk [vmem:[%s325 + $0x48] sm:$0xff] %vm1327, %v2346
      %p2357 = scmp.lt.s32.totalorder %s19, 1
      %s2358 = scalar_select %p2357, %s19, 1
      %s2359 = smul.addr %s2358, 10
      %s2360 = smul.addr %s2359, 8
      %s2361 = scalar_lea.vmem %s8, %s2360
      // Predicated region
      $region53: #{basic_block_forward.1} parent=51 // pred_check
        %p2362 = pneg %p215
      $region54: #{basic_block_forward.1} parent=51 // pred_check_branch
        %2364 = sbr.rel (%p2362) target = $region56
      $region55: #{basic_block_forward.1} parent=51 // pred_region
        _
      $region56: #{basic_block_forward.1} parent=51 // pred_fallthru
        _
    $region52: #{basic_block_forward.1} parent=5 // pred_fallthru
      _
    %p2365 = scmp.le.s32.totalorder 2, %s14
    // Predicated region
    $region57: #{basic_block_forward.1} parent=5 // pred_check
      %p2366 = pneg %p2365
    $region58: #{basic_block_forward.1} parent=5 // pred_check_branch
      %2368 = sbr.rel (%p2366) target = $region60
    $region59: #{basic_block_forward.1} parent=5 // pred_region
      %s2369 = ssub.s32 %s14, 2
      // Predicated region
      $region61: #{basic_block_forward.1} parent=59 // pred_check
        %p2370 = pneg %p221
      $region62: #{basic_block_forward.1} parent=59 // pred_check_branch
        %2372 = sbr.rel (%p2370) target = $region64
      $region63: #{basic_block_forward.1} parent=59 // pred_region
        %p2373 = scmp.lt.s32.totalorder %s20, 1
        %s2374 = scalar_select %p2373, %s20, 1
        %s2375 = smul.addr %s2374, 10
        %s2376 = smul.addr %s2375, 8
        %s2377 = scalar_lea.vmem %s8, %s2376
      $region64: #{basic_block_forward.1} parent=59 // pred_fallthru
        _
    $region60: #{basic_block_forward.1} parent=5 // pred_fallthru
      _
  $region6: #{basic_block_forward.1} parent=0 // loop_footer
    %s18 = sadd.s32 1, %s14
  $region7: #{basic_block_forward.1} parent=0 // loop_footer_branch
    %13 = sbr.rel target = $region3
  $region8: #{basic_block_forward.1} parent=0 // loop_exit
    _

</llo_original>
